<compile_context>
chip_gen: v7x
topology: tpu7x:2x2x1
jax: 0.10.0
libtpu: 0.0.40
codegen_flags: <defaults>
</compile_context>

<pallas_src>
import functools

import jax
import jax.numpy as jnp
from jax.experimental import pallas as pl
from jax.experimental.pallas import tpu as pltpu


def _tpu_generation_defaults():
    """(max feature-dim tile, scoped-VMEM limit) chosen per TPU generation."""
    vmem_bytes = 128 * 1024 * 1024
    try:
        info = pltpu.get_tpu_info()
        vmem_bytes = int(getattr(info, "vmem_capacity_bytes", vmem_bytes))
    except Exception:
        pass
    if vmem_bytes <= 64 * 1024 * 1024:
        # v7x-class: 64 MiB VMEM / TC -> small CV tiles + modest scoped limit.
        return 256, 40 * 1024 * 1024
    # v5e / v6e: 128 MiB physical VMEM -> full-A tiles for detection-sized A so the
    # reduction grid axis (and its per-step overhead / per-r recompute) disappears.
    return 2048, 96 * 1024 * 1024


_MAX_TILE, _VMEM_LIMIT = _tpu_generation_defaults()


def _pick_tile(A, max_tile=_MAX_TILE):
    """Tile along the feature dim A: full A if it fits, else a 128-multiple divisor."""
    if A <= max_tile:
        return A
    for t in (2048, 1024, 512, 256, 128):
        if t <= max_tile and A % t == 0:
            return t
    return A  # TODO(synk): pad odd feature dims instead of falling back to full-A blocks.


# ----------------------------------------------------------------------------
# Kernel 1: fc(features)  ->  y = features @ W^T + b
# bf16 MXU operands (f32 accumulate), weights pre-transposed + lane-padded so the
# stores are unmasked, N-blocked.
# ----------------------------------------------------------------------------
def _linear_kernel(x_ref, w_ref, b_ref, o_ref):
    o_ref[...] = jnp.dot(x_ref[...], w_ref[...],
                         preferred_element_type=jnp.float32) + b_ref[...]


def pallas_linear(x, w, b, max_tn=256):
    N, A = x.shape
    cout = w.shape[0]
    P = ((cout + 127) // 128) * 128                      # lane-dense padded out width
    wt = jnp.zeros((A, P), jnp.bfloat16).at[:, :cout].set(w.T.astype(jnp.bfloat16))
    bp = jnp.zeros((1, P), jnp.float32).at[:, :cout].set(
        b.reshape(1, -1).astype(jnp.float32))

    TN = N if N <= max_tn else max_tn
    Np = ((N + TN - 1) // TN) * TN
    xp = x.astype(jnp.bfloat16)
    if Np != N:
        xp = jnp.pad(xp, ((0, Np - N), (0, 0)))

    out = pl.pallas_call(
        _linear_kernel,
        grid_spec=pltpu.PrefetchScalarGridSpec(
            num_scalar_prefetch=0,
            grid=(Np // TN,),
            in_specs=[pl.BlockSpec((TN, A), lambda i: (i, 0)),
                      pl.BlockSpec((A, P), lambda i: (0, 0)),
                      pl.BlockSpec((1, P), lambda i: (0, 0))],
            out_specs=pl.BlockSpec((TN, P), lambda i: (i, 0)),
        ),
        out_shape=jax.ShapeDtypeStruct((Np, P), jnp.float32),
        compiler_params=pltpu.CompilerParams(dimension_semantics=("parallel",)),
    )(xp, wt, bp)
    return out[:N, :cout]


# ----------------------------------------------------------------------------
# Kernel 2: fused EstimatorCV.update_CV.  Grid (C, A//TA).
# Per class (r == 0): mask, count, class mean, centered+masked features (bf16, in
# scratch), EMA weight, mean diff, and the new Ave row.
# Per row tile r: rows [r*TA,(r+1)*TA) of X_c^T X_c / count and of the mean-shift
# outer product, plus the full EMA covariance update.  No (N,C,A) intermediates,
# no redundant feature-column DMA, CoVariance aliased in place.
# ----------------------------------------------------------------------------
def _cov_update_kernel(labels_ref, x_ref, ave_ref, cov_ref, amount_ref,
                       newcov_ref, newave_ref,
                       xc_sc, diff_sc, denom_sc, w_sc, *, TA, nr):
    c = pl.program_id(0)
    r = pl.program_id(1)

    @pl.when(r == 0)
    def _():
        x = x_ref[...]                                             # (N, A) f32
        mask = (labels_ref[...] == c).astype(jnp.float32)          # (N, 1)
        cnt = jnp.sum(mask, axis=0, keepdims=True)                 # (1, 1)
        denom = jnp.maximum(cnt, 1.0)                              # Amount_CxA==0 -> 1
        ave_c = jnp.sum(x * mask, axis=0, keepdims=True) / denom   # (1, A)
        xc_sc[...] = ((x - ave_c) * mask).astype(jnp.bfloat16)     # centered, masked
        amount_c = amount_ref[c]                                   # SMEM scalar (pre-update)
        wden = cnt + amount_c
        w = cnt / jnp.where(wden > 0.0, wden, 1.0)                 # weight_CV == weight_AV
        old_ave = ave_ref[0]                                       # (1, A)
        diff_sc[...] = old_ave - ave_c
        denom_sc[...] = denom
        w_sc[...] = w
        newave_ref[0] = old_ave * (1.0 - w) + ave_c * w

    denom = denom_sc[...]
    w = w_sc[...]
    if nr == 1:
        xc_ch = xc_sc[...]
        diff_ch = diff_sc[...]
    else:
        col = pl.multiple_of(r * TA, TA)                           # TA is a multiple of 128
        xc_ch = xc_sc[:, pl.ds(col, TA)]
        diff_ch = diff_sc[:, pl.ds(col, TA)]

    # rows of (X_c^T X_c) / count  -- bf16 MXU operands, f32 accumulate
    cov_rows = jax.lax.dot_general(
        xc_ch, xc_sc[...],
        dimension_numbers=(((0,), (0,)), ((), ())),
        preferred_element_type=jnp.float32) / denom                # (TA, A)

    # rank-1 (Ave_old - ave_c) outer-product rows (tiny; kept in f32)
    outer_rows = jax.lax.dot_general(
        diff_ch, diff_sc[...],
        dimension_numbers=(((0,), (0,)), ((), ())),
        preferred_element_type=jnp.float32)                        # (TA, A)

    newcov_ref[0] = (cov_ref[0] * (1.0 - w) + cov_rows * w
                     + (w * (1.0 - w)) * outer_rows)


def update_cv_stats(features, labels, Ave, CoVariance, Amount, class_num):
    N, A = features.shape
    C = class_num
    TA = _pick_tile(A)
    nr = A // TA
    # Pad N to a multiple of 16 (clean bf16 sublane packing for the transposed-LHS
    # Gram matmul); padded rows get label -1 so they never match any class.
    Np = ((N + 15) // 16) * 16
    x = features.astype(jnp.float32)
    lbl = labels.reshape(N, 1).astype(jnp.int32)
    if Np != N:
        x = jnp.pad(x, ((0, Np - N), (0, 0)))
        lbl_p = jnp.pad(lbl, ((0, Np - N), (0, 0)), constant_values=-1)
    else:
        lbl_p = lbl
    ave3 = Ave.reshape(C, 1, A).astype(jnp.float32)
    cov = CoVariance.astype(jnp.float32)
    amount_f32 = Amount.astype(jnp.float32)

    kernel = functools.partial(_cov_update_kernel, TA=TA, nr=nr)
    # TODO(synk): pipeline_mode=pl.Buffered(1) on the constant-index labels/features
    # blocks once single-buffered resident operands are validated on all targets.
    new_cov, new_ave3 = pl.pallas_call(
        kernel,
        grid_spec=pltpu.PrefetchScalarGridSpec(
            num_scalar_prefetch=0,
            grid=(C, nr),
            in_specs=[
                pl.BlockSpec((Np, 1), lambda c, r: (0, 0)),          # labels (resident)
                pl.BlockSpec((Np, A), lambda c, r: (0, 0)),          # features (resident)
                pl.BlockSpec((1, 1, A), lambda c, r: (c, 0, 0)),     # Ave[c]
                pl.BlockSpec((1, TA, A), lambda c, r: (c, r, 0)),    # CoVariance[c] row tile
                pl.BlockSpec(memory_space=pltpu.MemorySpace.SMEM),   # Amount (pre-update)
            ],
            out_specs=[
                pl.BlockSpec((1, TA, A), lambda c, r: (c, r, 0)),    # new CoVariance rows
                pl.BlockSpec((1, 1, A), lambda c, r: (c, 0, 0)),     # new Ave
            ],
            scratch_shapes=[
                pltpu.VMEM((Np, A), jnp.bfloat16),     # centered, masked features
                pltpu.VMEM((1, A), jnp.float32),       # Ave_old - ave_c
                pltpu.VMEM((1, 1), jnp.float32),       # count (>= 1)
                pltpu.VMEM((1, 1), jnp.float32),       # EMA weight
            ],
        ),
        out_shape=(jax.ShapeDtypeStruct((C, A, A), jnp.float32),
                   jax.ShapeDtypeStruct((C, 1, A), jnp.float32)),
        input_output_aliases={3: 0},        # CoVariance updated in place (one HBM copy)
        compiler_params=pltpu.CompilerParams(
            dimension_semantics=("parallel", "arbitrary"),
            vmem_limit_bytes=_VMEM_LIMIT),
    )(lbl_p, x, ave3, cov, amount_f32)

    counts = jnp.sum(
        (lbl == jnp.arange(C, dtype=jnp.int32)[None, :]).astype(jnp.float32), axis=0)
    new_amount = Amount + counts
    return new_ave3.reshape(C, A), new_cov, new_amount


# ----------------------------------------------------------------------------
# Kernel 3: per-CLASS sigma2 table.
#   table[k, c]     = ratio * (w_c  - w_k )  CV[k] (w_c  - w_k )^T   (student cols)
#   table[k, C + c] = ratio * (wt_c - wt_k) CV[k] (wt_c - wt_k)^T    (teacher cols)
# Grid (C, A//TJ).  Stacked fc/fc_t weights are one resident (2C, A) operand; CV[k]
# is streamed as column tiles; per step one fused bf16 MXU dot (dd @ CV[:, chunk])
# and a lane-reduce accumulate into a tiny (2C, 1) scalar accumulator.  Each class
# writes one lane-dense (1, 1, 2C) row; samples gather rows later by label.
# ----------------------------------------------------------------------------
def _sigma2_kernel(ratio_ref, ws_ref, cv_ref, out_ref, acc_ref, *, C, TJ, nj):
    k = pl.program_id(0)
    j = pl.program_id(1)

    @pl.when(j == 0)
    def _():
        acc_ref[...] = jnp.zeros_like(acc_ref)

    ws = ws_ref[...]                                       # (2C, A) f32 (resident)
    wk = ws_ref[pl.ds(k, 1), :]                            # student row k   (1, A)
    wtk = ws_ref[pl.ds(C + k, 1), :]                       # teacher row k   (1, A)
    rows = jax.lax.broadcasted_iota(jnp.int32, (2 * C, 1), 0)
    dd = ws - jnp.where(rows < C, wk, wtk)                 # stacked (w_c - w_k) diffs

    # dd @ CV[k][:, column chunk j]  -- bf16 MXU operands, f32 accumulate
    v = jnp.dot(dd.astype(jnp.bfloat16), cv_ref[0].astype(jnp.bfloat16),
                preferred_element_type=jnp.float32)        # (2C, TJ)

    if nj == 1:
        dd_ch = dd
    else:
        col = pl.multiple_of(j * TJ, TJ)                   # TJ is a multiple of 128
        wk_ch = ws_ref[pl.ds(k, 1), pl.ds(col, TJ)]
        wtk_ch = ws_ref[pl.ds(C + k, 1), pl.ds(col, TJ)]
        dd_ch = ws_ref[:, pl.ds(col, TJ)] - jnp.where(rows < C, wk_ch, wtk_ch)

    # partial quadratic form over this column chunk
    acc_ref[...] += jnp.sum(v * dd_ch, axis=1, keepdims=True)       # (2C, 1)

    @pl.when(j == pl.num_programs(1) - 1)
    def _():
        q = ratio_ref[0] * jnp.sum(acc_ref[...], axis=1)   # (2C,)
        out_ref[...] = q[None, None, :]                    # lane-dense (1, 1, 2C)


def pallas_isda_sigma2_table(ws, cv_matrix, ratio, class_num):
    C = class_num
    A = ws.shape[1]
    TJ = _pick_tile(A)
    nj = A // TJ
    ratio_arr = jnp.asarray(ratio, dtype=jnp.float32).reshape(1)
    kernel = functools.partial(_sigma2_kernel, C=C, TJ=TJ, nj=nj)
    # TODO(synk): block the class axis (KB classes per grid step) to fill the 256-row
    # MXU on v6e/v7x if profiling shows the kernel is no longer CV-DMA bound.
    out = pl.pallas_call(
        kernel,
        grid_spec=pltpu.PrefetchScalarGridSpec(
            num_scalar_prefetch=0,
            grid=(C, nj),
            in_specs=[
                pl.BlockSpec(memory_space=pltpu.MemorySpace.SMEM),   # ratio (no recompile)
                pl.BlockSpec((2 * C, A), lambda k, j: (0, 0)),       # stacked fc/fc_t weights
                pl.BlockSpec((1, A, TJ), lambda k, j: (k, 0, j)),    # CV[k] column tile
            ],
            out_specs=pl.BlockSpec((1, 1, 2 * C), lambda k, j: (k, 0, 0)),
            scratch_shapes=[pltpu.VMEM((2 * C, 1), jnp.float32)],
        ),
        out_shape=jax.ShapeDtypeStruct((C, 1, 2 * C), jnp.float32),
        compiler_params=pltpu.CompilerParams(
            dimension_semantics=("parallel", "arbitrary"),
            vmem_limit_bytes=_VMEM_LIMIT),
    )(ratio_arr, ws.astype(jnp.float32), cv_matrix)
    return out.reshape(C, 2 * C)


# ----------------------------------------------------------------------------
# Kernel 4: fused sigma2 gather + augmentation + loss.
#   aug_y   = y + 0.5 * table_s[label],  aug_y_t = y + 0.5 * table_t[label]
#   loss    = CrossEntropy(aug_y, label) (mean over batch)
#           + KLDiv(log_softmax(aug_y), softmax(aug_y_t)) ('mean' -> / (N*C))
# The row gather is an exact one-hot MXU matmul; N-blocked with VMEM accumulators
# so nothing round-trips through HBM and large RoI batches stay pipelined.
# ----------------------------------------------------------------------------
def _loss_kernel(y_ref, table_ref, lbl_ref, loss_ref, ce_acc, kl_acc, *, C, n_valid):
    i = pl.program_id(0)

    @pl.when(i == 0)
    def _():
        ce_acc[...] = jnp.zeros_like(ce_acc)
        kl_acc[...] = jnp.zeros_like(kl_acc)

    y = y_ref[...]                                          # (TN, C) f32
    lbl = lbl_ref[...]                                      # (TN, 1) int32 (-1 = padding)
    col = jax.lax.broadcasted_iota(jnp.int32, y.shape, 1)
    oh = (col == lbl).astype(jnp.float32)                   # (TN, C), all-zero for padding
    valid = (lbl >= 0).astype(jnp.float32)                  # (TN, 1)

    # exact row gather of the per-class sigma2 table
    sig = jnp.dot(oh, table_ref[...], preferred_element_type=jnp.float32)  # (TN, 2C)
    aug_y = y + 0.5 * sig[:, :C]
    aug_y_t = y + 0.5 * sig[:, C:]                          # y_t == y in this path

    # cross entropy (per-sample sum; mean taken at finalize)
    m = jnp.max(aug_y, axis=1, keepdims=True)
    lse = m + jnp.log(jnp.sum(jnp.exp(aug_y - m), axis=1, keepdims=True))
    picked = jnp.sum(aug_y * oh, axis=1, keepdims=True)
    ce_acc[...] += jnp.sum((lse - picked) * valid, keepdims=True)

    # KL( softmax(aug_y_t) || softmax(aug_y) ), elementwise-'mean' reduction
    logp = aug_y - lse
    mt = jnp.max(aug_y_t, axis=1, keepdims=True)
    lset = mt + jnp.log(jnp.sum(jnp.exp(aug_y_t - mt), axis=1, keepdims=True))
    pt = jnp.exp(aug_y_t - lset)
    kl_acc[...] += jnp.sum(
        jnp.sum(pt * ((aug_y_t - lset) - logp), axis=1, keepdims=True) * valid,
        keepdims=True)

    @pl.when(i == pl.num_programs(0) - 1)
    def _():
        loss_ref[...] = ce_acc[...] / n_valid + kl_acc[...] / (n_valid * C)


def pallas_isda_loss(y, table, labels, class_num):
    N, C = y.shape
    TN = N if N <= 512 else 256
    Np = ((N + TN - 1) // TN) * TN
    yp = y if Np == N else jnp.pad(y, ((0, Np - N), (0, 0)))
    lbl = labels.reshape(N, 1).astype(jnp.int32)
    lblp = lbl if Np == N else jnp.pad(lbl, ((0, Np - N), (0, 0)), constant_values=-1)
    kernel = functools.partial(_loss_kernel, C=C, n_valid=float(N))
    return pl.pallas_call(
        kernel,
        grid_spec=pltpu.PrefetchScalarGridSpec(
            num_scalar_prefetch=0,
            grid=(Np // TN,),
            in_specs=[pl.BlockSpec((TN, C), lambda i: (i, 0)),
                      pl.BlockSpec((C, 2 * C), lambda i: (0, 0)),
                      pl.BlockSpec((TN, 1), lambda i: (i, 0))],
            out_specs=pl.BlockSpec((1, 1), lambda i: (0, 0)),
            scratch_shapes=[pltpu.VMEM((1, 1), jnp.float32),
                            pltpu.VMEM((1, 1), jnp.float32)],
        ),
        out_shape=jax.ShapeDtypeStruct((1, 1), jnp.float32),
        compiler_params=pltpu.CompilerParams(dimension_semantics=("arbitrary",)),
    )(yp, table, lblp)[0, 0]


# ----------------------------------------------------------------------------
# ISDALoss.forward (functional; estimator buffers passed in/out as `state`).
# Fully traceable: the `sum(Amount) > 200` gate is a jnp.where select (no host
# sync) and ratio flows through SMEM so annealing it does not recompile.
# ----------------------------------------------------------------------------
def isda_loss_forward(params, state, features, target_x, ratio, class_num):
    # y = fc(features)[:, 1:]   (y_t == y; fc_t only supplies weight_m_t)
    y = pallas_linear(features, params["fc_w"], params["fc_b"])[:, 1:]       # (N, C)

    new_ave, new_cov, new_amount = update_cv_stats(
        features, target_x, state["Ave"], state["CoVariance"], state["Amount"],
        class_num)
    new_state = dict(Ave=new_ave, CoVariance=new_cov, Amount=new_amount)

    # TODO(synk): kg-based covariance mixing (kg is None in this path) not implemented.
    weight_m = params["fc_w"][1:, :]                                         # (C, A)
    weight_m_t = params["fc_t_w"][1:, :]                                     # (C, A)
    ws = jnp.concatenate([weight_m, weight_m_t], axis=0)                     # (2C, A)
    table = pallas_isda_sigma2_table(ws, new_cov, ratio, class_num)          # (C, 2C)

    # sigma2 gather + augmentation + CE + KL fused in one kernel.
    aug_loss = pallas_isda_loss(y, table, target_x, class_num)

    # Reference checks `torch.sum(self.estimator.Amount) > 200` AFTER update_CV has
    # mutated Amount, so gating on the post-update new_amount is faithful.
    # (The reference also sets y = None in the cold branch; we always return y so
    # shapes stay static under jit.)
    loss = jnp.where(jnp.sum(new_amount) > 200.0, aug_loss, 0.0)
    return loss, y, new_state


if __name__ == "__main__":
    key = jax.random.PRNGKey(0)
    N, A, C = 8, 32, 8     # batch, feature_num, class_num
    k1, k2, k3, k4 = jax.random.split(key, 4)

    features = jax.random.normal(k1, (N, A), jnp.float32)
    target_x = jax.random.randint(k2, (N,), 0, C, jnp.int32)

    # nn.Linear(A, C+1) weights for fc and fc_t, deterministic init.
    params = dict(
        fc_w=0.1 * jax.random.normal(k3, (C + 1, A), jnp.float32),
        fc_b=jnp.zeros((C + 1,), jnp.float32),
        fc_t_w=0.1 * jax.random.normal(k4, (C + 1, A), jnp.float32),
    )
    # EstimatorCV buffers (PyTorch inits all to zeros; Amount pre-warmed so that
    # sum(Amount) > 200 and the augmented-loss branch is exercised deterministically).
    state = dict(
        Ave=jnp.zeros((C, A), jnp.float32),
        CoVariance=jnp.zeros((C, A, A), jnp.float32),
        Amount=jnp.full((C,), 30.0, jnp.float32),
    )

    fwd = jax.jit(functools.partial(isda_loss_forward, class_num=C))
    loss, y, new_state = fwd(params, state, features, target_x, jnp.float32(0.5))
    jax.block_until_ready((loss, y, new_state))
    print("KERNEL_OK")
</pallas_src>

<mosaic_0001>
module attributes {stable_mosaic.version = 11 : i64} {
  func.func @_cov_update_kernel(%arg0: i32, %arg1: i32, %arg2: memref<16x1xi32, #tpu.memory_space<vmem>>, %arg3: memref<16x32xf32, #tpu.memory_space<vmem>>, %arg4: memref<1x1x32xf32, #tpu.memory_space<vmem>>, %arg5: memref<1x32x32xf32, #tpu.memory_space<vmem>>, %arg6: memref<8xf32, #tpu.memory_space<smem>>, %arg7: memref<1x32x32xf32, #tpu.memory_space<vmem>>, %arg8: memref<1x1x32xf32, #tpu.memory_space<vmem>>, %arg9: memref<16x32xbf16, #tpu.memory_space<vmem>>, %arg10: memref<1x32xf32, #tpu.memory_space<vmem>>, %arg11: memref<1x1xf32, #tpu.memory_space<vmem>>, %arg12: memref<1x1xf32, #tpu.memory_space<vmem>>) attributes {dimension_semantics = [#tpu.dimension_semantics<parallel>, #tpu.dimension_semantics<arbitrary>], iteration_bounds = array<i64: 8, 1>, scalar_prefetch = 0 : i64, scratch_operands = 4 : i64, tpu.core_type = #tpu.core_type<tc>, window_params = [{pipeline_mode = #tpu.pipeline_mode<synchronous>, transform_indices = @transform_0, window_bounds = array<i64: 16, 1>}, {pipeline_mode = #tpu.pipeline_mode<synchronous>, transform_indices = @transform_1, window_bounds = array<i64: 16, 32>}, {transform_indices = @transform_2, window_bounds = array<i64: 1, 1, 32>}, {transform_indices = @transform_3, window_bounds = array<i64: 1, 32, 32>}, {transform_indices = @transform_4, window_bounds = array<i64: 8>}, {transform_indices = @transform_5, window_bounds = array<i64: 1, 32, 32>}, {transform_indices = @transform_6, window_bounds = array<i64: 1, 1, 32>}]} {
    %c0_i32 = arith.constant 0 : i32
    %0 = arith.cmpi eq, %arg1, %c0_i32 : i32
    %1 = arith.extui %0 : i1 to i32
    %c0_i32_0 = arith.constant 0 : i32
    %2 = arith.cmpi ne, %1, %c0_i32_0 : i32
    scf.if %2 {
      %c0_21 = arith.constant 0 : index
      %c0_22 = arith.constant 0 : index
      %31 = vector.load %arg3[%c0_21, %c0_22] : memref<16x32xf32, #tpu.memory_space<vmem>>, vector<16x32xf32>
      %c0_23 = arith.constant 0 : index
      %c0_24 = arith.constant 0 : index
      %32 = vector.load %arg2[%c0_23, %c0_24] : memref<16x1xi32, #tpu.memory_space<vmem>>, vector<16x1xi32>
      %33 = vector.broadcast %arg0 : i32 to vector<16x1xi32>
      %34 = arith.cmpi eq, %32, %33 : vector<16x1xi32>
      %35 = arith.extui %34 : vector<16x1xi1> to vector<16x1xi32>
      %36 = arith.sitofp %35 : vector<16x1xi32> to vector<16x1xf32>
      %cst_25 = arith.constant dense<0.000000e+00> : vector<1xf32>
      %37 = vector.multi_reduction <add>, %36, %cst_25 [0] : vector<16x1xf32> to vector<1xf32>
      %38 = vector.shape_cast %37 : vector<1xf32> to vector<1x1xf32>
      %cst_26 = arith.constant 1.000000e+00 : f32
      %39 = vector.broadcast %cst_26 : f32 to vector<1x1xf32>
      %40 = arith.maximumf %38, %39 : vector<1x1xf32>
      %41 = vector.broadcast %36 : vector<16x1xf32> to vector<16x32xf32>
      %42 = arith.mulf %31, %41 : vector<16x32xf32>
      %cst_27 = arith.constant dense<0.000000e+00> : vector<32xf32>
      %43 = vector.multi_reduction <add>, %42, %cst_27 [0] : vector<16x32xf32> to vector<32xf32>
      %44 = vector.shape_cast %43 : vector<32xf32> to vector<1x32xf32>
      %45 = vector.broadcast %40 : vector<1x1xf32> to vector<1x32xf32>
      %46 = arith.divf %44, %45 : vector<1x32xf32>
      %47 = vector.broadcast %46 : vector<1x32xf32> to vector<16x32xf32>
      %48 = arith.subf %31, %47 : vector<16x32xf32>
      %49 = vector.broadcast %36 : vector<16x1xf32> to vector<16x32xf32>
      %50 = arith.mulf %48, %49 : vector<16x32xf32>
      %51 = arith.truncf %50 : vector<16x32xf32> to vector<16x32xbf16>
      %c0_28 = arith.constant 0 : index
      %c0_29 = arith.constant 0 : index
      %52 = vector.load %arg9[%c0_28, %c0_29] : memref<16x32xbf16, #tpu.memory_space<vmem>>, vector<16x32xbf16>
      tpu.vector_store %arg9[%c0_28, %c0_29], %51 {strides = array<i32>} : memref<16x32xbf16, #tpu.memory_space<vmem>>, vector<16x32xbf16>,
      %53 = arith.index_cast %arg0 : i32 to index
      %54 = memref.load %arg6[%53] : memref<8xf32, #tpu.memory_space<smem>>
      %55 = vector.broadcast %54 : f32 to vector<1x1xf32>
      %56 = arith.addf %38, %55 : vector<1x1xf32>
      %cst_30 = arith.constant 0.000000e+00 : f32
      %57 = vector.broadcast %cst_30 : f32 to vector<1x1xf32>
      %58 = arith.cmpf ogt, %56, %57 : vector<1x1xf32>
      %cst_31 = arith.constant 1.000000e+00 : f32
      %59 = vector.broadcast %cst_31 : f32 to vector<1x1xf32>
      %60 = arith.select %58, %56, %59 : vector<1x1xi1>, vector<1x1xf32>
      %61 = arith.divf %38, %60 : vector<1x1xf32>
      %c0_32 = arith.constant 0 : index
      %c0_33 = arith.constant 0 : index
      %c0_34 = arith.constant 0 : index
      %62 = vector.load %arg4[%c0_32, %c0_33, %c0_34] : memref<1x1x32xf32, #tpu.memory_space<vmem>>, vector<1x1x32xf32>
      %63 = vector.shape_cast %62 : vector<1x1x32xf32> to vector<1x32xf32>
      %64 = arith.subf %63, %46 : vector<1x32xf32>
      %c0_35 = arith.constant 0 : index
      %c0_36 = arith.constant 0 : index
      %65 = vector.load %arg10[%c0_35, %c0_36] : memref<1x32xf32, #tpu.memory_space<vmem>>, vector<1x32xf32>
      tpu.vector_store %arg10[%c0_35, %c0_36], %64 {strides = array<i32>} : memref<1x32xf32, #tpu.memory_space<vmem>>, vector<1x32xf32>,
      %c0_37 = arith.constant 0 : index
      %c0_38 = arith.constant 0 : index
      %66 = vector.load %arg11[%c0_37, %c0_38] : memref<1x1xf32, #tpu.memory_space<vmem>>, vector<1x1xf32>
      tpu.vector_store %arg11[%c0_37, %c0_38], %40 {strides = array<i32>} : memref<1x1xf32, #tpu.memory_space<vmem>>, vector<1x1xf32>,
      %c0_39 = arith.constant 0 : index
      %c0_40 = arith.constant 0 : index
      %67 = vector.load %arg12[%c0_39, %c0_40] : memref<1x1xf32, #tpu.memory_space<vmem>>, vector<1x1xf32>
      tpu.vector_store %arg12[%c0_39, %c0_40], %61 {strides = array<i32>} : memref<1x1xf32, #tpu.memory_space<vmem>>, vector<1x1xf32>,
      %cst_41 = arith.constant 1.000000e+00 : f32
      %68 = vector.broadcast %cst_41 : f32 to vector<1x1xf32>
      %69 = arith.subf %68, %61 : vector<1x1xf32>
      %70 = vector.broadcast %69 : vector<1x1xf32> to vector<1x32xf32>
      %71 = arith.mulf %63, %70 : vector<1x32xf32>
      %72 = vector.broadcast %61 : vector<1x1xf32> to vector<1x32xf32>
      %73 = arith.mulf %46, %72 : vector<1x32xf32>
      %74 = arith.addf %71, %73 : vector<1x32xf32>
      %c0_42 = arith.constant 0 : index
      %c0_43 = arith.constant 0 : index
      %c0_44 = arith.constant 0 : index
      %75 = vector.load %arg8[%c0_42, %c0_43, %c0_44] : memref<1x1x32xf32, #tpu.memory_space<vmem>>, vector<1x1x32xf32>
      %76 = vector.shape_cast %75 : vector<1x1x32xf32> to vector<1x32xf32>
      %77 = vector.shape_cast %74 : vector<1x32xf32> to vector<1x1x32xf32>
      tpu.vector_store %arg8[%c0_42, %c0_43, %c0_44], %77 {strides = array<i32>} : memref<1x1x32xf32, #tpu.memory_space<vmem>>, vector<1x1x32xf32>,
    } else {
    }
    %c0 = arith.constant 0 : index
    %c0_1 = arith.constant 0 : index
    %3 = vector.load %arg11[%c0, %c0_1] : memref<1x1xf32, #tpu.memory_space<vmem>>, vector<1x1xf32>
    %c0_2 = arith.constant 0 : index
    %c0_3 = arith.constant 0 : index
    %4 = vector.load %arg12[%c0_2, %c0_3] : memref<1x1xf32, #tpu.memory_space<vmem>>, vector<1x1xf32>
    %c0_4 = arith.constant 0 : index
    %c0_5 = arith.constant 0 : index
    %5 = vector.load %arg9[%c0_4, %c0_5] : memref<16x32xbf16, #tpu.memory_space<vmem>>, vector<16x32xbf16>
    %c0_6 = arith.constant 0 : index
    %c0_7 = arith.constant 0 : index
    %6 = vector.load %arg10[%c0_6, %c0_7] : memref<1x32xf32, #tpu.memory_space<vmem>>, vector<1x32xf32>
    %c0_8 = arith.constant 0 : index
    %c0_9 = arith.constant 0 : index
    %7 = vector.load %arg9[%c0_8, %c0_9] : memref<16x32xbf16, #tpu.memory_space<vmem>>, vector<16x32xbf16>
    %cst = arith.constant dense<0.000000e+00> : vector<32x32xf32>
    %8 = tpu.matmul %5, %7, %cst {dimension_numbers = #tpu.dot_dimension_numbers<[0], [0], [1], [1], [0, 1, 1, 1], [], []>} : vector<16x32xbf16>, vector<16x32xbf16>, vector<32x32xf32> -> vector<32x32xf32>
    %9 = vector.broadcast %3 : vector<1x1xf32> to vector<32x32xf32>
    %10 = arith.divf %8, %9 : vector<32x32xf32>
    %c0_10 = arith.constant 0 : index
    %c0_11 = arith.constant 0 : index
    %11 = vector.load %arg10[%c0_10, %c0_11] : memref<1x32xf32, #tpu.memory_space<vmem>>, vector<1x32xf32>
    %cst_12 = arith.constant dense<0.000000e+00> : vector<32x32xf32>
    %12 = tpu.matmul %6, %11, %cst_12 {dimension_numbers = #tpu.dot_dimension_numbers<[0], [0], [1], [1], [0, 1, 1, 1], [], []>} : vector<1x32xf32>, vector<1x32xf32>, vector<32x32xf32> -> vector<32x32xf32>
    %c0_13 = arith.constant 0 : index
    %c0_14 = arith.constant 0 : index
    %c0_15 = arith.constant 0 : index
    %13 = vector.load %arg5[%c0_13, %c0_14, %c0_15] : memref<1x32x32xf32, #tpu.memory_space<vmem>>, vector<1x32x32xf32>
    %14 = vector.shape_cast %13 : vector<1x32x32xf32> to vector<32x32xf32>
    %cst_16 = arith.constant 1.000000e+00 : f32
    %15 = vector.broadcast %cst_16 : f32 to vector<1x1xf32>
    %16 = arith.subf %15, %4 : vector<1x1xf32>
    %17 = vector.broadcast %16 : vector<1x1xf32> to vector<32x32xf32>
    %18 = arith.mulf %14, %17 : vector<32x32xf32>
    %19 = vector.broadcast %4 : vector<1x1xf32> to vector<32x32xf32>
    %20 = arith.mulf %10, %19 : vector<32x32xf32>
    %21 = arith.addf %18, %20 : vector<32x32xf32>
    %cst_17 = arith.constant 1.000000e+00 : f32
    %22 = vector.broadcast %cst_17 : f32 to vector<1x1xf32>
    %23 = arith.subf %22, %4 : vector<1x1xf32>
    %24 = arith.mulf %4, %23 : vector<1x1xf32>
    %25 = vector.broadcast %24 : vector<1x1xf32> to vector<32x32xf32>
    %26 = arith.mulf %25, %12 : vector<32x32xf32>
    %27 = arith.addf %21, %26 : vector<32x32xf32>
    %c0_18 = arith.constant 0 : index
    %c0_19 = arith.constant 0 : index
    %c0_20 = arith.constant 0 : index
    %28 = vector.load %arg7[%c0_18, %c0_19, %c0_20] : memref<1x32x32xf32, #tpu.memory_space<vmem>>, vector<1x32x32xf32>
    %29 = vector.shape_cast %28 : vector<1x32x32xf32> to vector<32x32xf32>
    %30 = vector.shape_cast %27 : vector<32x32xf32> to vector<1x32x32xf32>
    tpu.vector_store %arg7[%c0_18, %c0_19, %c0_20], %30 {strides = array<i32>} : memref<1x32x32xf32, #tpu.memory_space<vmem>>, vector<1x32x32xf32>,
    return
  }
  func.func @transform_0(%arg0: i32, %arg1: i32) -> (i32, i32) {
    %c0_i32 = arith.constant 0 : i32
    %c0_i32_0 = arith.constant 0 : i32
    %c0_i32_1 = arith.constant 0 : i32
    return %c0_i32, %c0_i32_0 : i32, i32
  }
  func.func @transform_1(%arg0: i32, %arg1: i32) -> (i32, i32) {
    %c0_i32 = arith.constant 0 : i32
    %c0_i32_0 = arith.constant 0 : i32
    %c0_i32_1 = arith.constant 0 : i32
    return %c0_i32, %c0_i32_0 : i32, i32
  }
  func.func @transform_2(%arg0: i32, %arg1: i32) -> (i32, i32, i32) {
    %c0_i32 = arith.constant 0 : i32
    %c0_i32_0 = arith.constant 0 : i32
    %c0_i32_1 = arith.constant 0 : i32
    return %arg0, %c0_i32, %c0_i32_0 : i32, i32, i32
  }
  func.func @transform_3(%arg0: i32, %arg1: i32) -> (i32, i32, i32) {
    %c0_i32 = arith.constant 0 : i32
    %c0_i32_0 = arith.constant 0 : i32
    return %arg0, %arg1, %c0_i32 : i32, i32, i32
  }
  func.func @transform_4(%arg0: i32, %arg1: i32) -> i32 {
    %c0_i32 = arith.constant 0 : i32
    %c0_i32_0 = arith.constant 0 : i32
    return %c0_i32 : i32
  }
  func.func @transform_5(%arg0: i32, %arg1: i32) -> (i32, i32, i32) {
    %c0_i32 = arith.constant 0 : i32
    %c0_i32_0 = arith.constant 0 : i32
    return %arg0, %arg1, %c0_i32 : i32, i32, i32
  }
  func.func @transform_6(%arg0: i32, %arg1: i32) -> (i32, i32, i32) {
    %c0_i32 = arith.constant 0 : i32
    %c0_i32_0 = arith.constant 0 : i32
    %c0_i32_1 = arith.constant 0 : i32
    return %arg0, %c0_i32, %c0_i32_0 : i32, i32, i32
  }
}

module attributes {stable_mosaic.version = 11 : i64} {
  func.func @_sigma2_kernel(%arg0: i32, %arg1: i32, %arg2: memref<1xf32, #tpu.memory_space<smem>>, %arg3: memref<16x32xf32, #tpu.memory_space<vmem>>, %arg4: memref<1x32x32xf32, #tpu.memory_space<vmem>>, %arg5: memref<1x1x16xf32, #tpu.memory_space<vmem>>, %arg6: memref<16x1xf32, #tpu.memory_space<vmem>>) attributes {dimension_semantics = [#tpu.dimension_semantics<parallel>, #tpu.dimension_semantics<arbitrary>], iteration_bounds = array<i64: 8, 1>, scalar_prefetch = 0 : i64, scratch_operands = 1 : i64, tpu.core_type = #tpu.core_type<tc>, window_params = [{transform_indices = @transform_0, window_bounds = array<i64: 1>}, {pipeline_mode = #tpu.pipeline_mode<synchronous>, transform_indices = @transform_1, window_bounds = array<i64: 16, 32>}, {transform_indices = @transform_2, window_bounds = array<i64: 1, 32, 32>}, {transform_indices = @transform_3, window_bounds = array<i64: 1, 1, 16>}]} {
    %c0_i32 = arith.constant 0 : i32
    %0 = arith.cmpi eq, %arg1, %c0_i32 : i32
    %1 = arith.extui %0 : i1 to i32
    %c0_i32_0 = arith.constant 0 : i32
    %2 = arith.cmpi ne, %1, %c0_i32_0 : i32
    scf.if %2 {
      %cst_15 = arith.constant 0.000000e+00 : f32
      %34 = vector.broadcast %cst_15 : f32 to vector<16x1xf32>
      %c0_16 = arith.constant 0 : index
      %c0_17 = arith.constant 0 : index
      %35 = vector.load %arg6[%c0_16, %c0_17] : memref<16x1xf32, #tpu.memory_space<vmem>>, vector<16x1xf32>
      tpu.vector_store %arg6[%c0_16, %c0_17], %34 {strides = array<i32>} : memref<16x1xf32, #tpu.memory_space<vmem>>, vector<16x1xf32>,
    } else {
    }
    %c0 = arith.constant 0 : index
    %c0_1 = arith.constant 0 : index
    %3 = vector.load %arg3[%c0, %c0_1] : memref<16x32xf32, #tpu.memory_space<vmem>>, vector<16x32xf32>
    %4 = arith.index_cast %arg0 : i32 to index
    %c0_2 = arith.constant 0 : index
    %5 = vector.load %arg3[%4, %c0_2] : memref<16x32xf32, #tpu.memory_space<vmem>>, vector<1x32xf32>
    %c8_i32 = arith.constant 8 : i32
    %6 = arith.addi %c8_i32, %arg0 : i32
    %7 = arith.index_cast %6 : i32 to index
    %c0_3 = arith.constant 0 : index
    %8 = vector.load %arg3[%7, %c0_3] : memref<16x32xf32, #tpu.memory_space<vmem>>, vector<1x32xf32>
    %9 = tpu.iota {dimensions = array<i32: 0>} : vector<16x1xi32>
    %c8_i32_4 = arith.constant 8 : i32
    %10 = vector.broadcast %c8_i32_4 : i32 to vector<16x1xi32>
    %11 = arith.cmpi slt, %9, %10 : vector<16x1xi32>
    %12 = vector.shape_cast %11 : vector<16x1xi1> to vector<16x1xi1>
    %13 = vector.broadcast %12 : vector<16x1xi1> to vector<16x32xi1>
    %14 = vector.shape_cast %5 : vector<1x32xf32> to vector<1x32xf32>
    %15 = vector.broadcast %14 : vector<1x32xf32> to vector<16x32xf32>
    %16 = vector.shape_cast %8 : vector<1x32xf32> to vector<1x32xf32>
    %17 = vector.broadcast %16 : vector<1x32xf32> to vector<16x32xf32>
    %18 = arith.select %13, %15, %17 : vector<16x32xi1>, vector<16x32xf32>
    %19 = arith.subf %3, %18 : vector<16x32xf32>
    %20 = arith.truncf %19 : vector<16x32xf32> to vector<16x32xbf16>
    %c0_5 = arith.constant 0 : index
    %c0_6 = arith.constant 0 : index
    %c0_7 = arith.constant 0 : index
    %21 = vector.load %arg4[%c0_5, %c0_6, %c0_7] : memref<1x32x32xf32, #tpu.memory_space<vmem>>, vector<1x32x32xf32>
    %22 = vector.shape_cast %21 : vector<1x32x32xf32> to vector<32x32xf32>
    %23 = arith.truncf %22 : vector<32x32xf32> to vector<32x32xbf16>
    %cst = arith.constant dense<0.000000e+00> : vector<16x32xf32>
    %24 = tpu.matmul %20, %23, %cst {dimension_numbers = #tpu.dot_dimension_numbers<[1], [0], [0], [1], [0, 0, 1, 1], [], []>} : vector<16x32xbf16>, vector<32x32xbf16>, vector<16x32xf32> -> vector<16x32xf32>
    %c0_8 = arith.constant 0 : index
    %c0_9 = arith.constant 0 : index
    %25 = vector.load %arg6[%c0_8, %c0_9] : memref<16x1xf32, #tpu.memory_space<vmem>>, vector<16x1xf32>
    %26 = arith.mulf %24, %19 : vector<16x32xf32>
    %cst_10 = arith.constant dense<0.000000e+00> : vector<16xf32>
    %27 = vector.multi_reduction <add>, %26, %cst_10 [1] : vector<16x32xf32> to vector<16xf32>
    %28 = vector.shape_cast %27 : vector<16xf32> to vector<16x1xf32>
    %29 = arith.addf %25, %28 : vector<16x1xf32>
    %c0_11 = arith.constant 0 : index
    %c0_12 = arith.constant 0 : index
    %30 = vector.load %arg6[%c0_11, %c0_12] : memref<16x1xf32, #tpu.memory_space<vmem>>, vector<16x1xf32>
    tpu.vector_store %arg6[%c0_11, %c0_12], %29 {strides = array<i32>} : memref<16x1xf32, #tpu.memory_space<vmem>>, vector<16x1xf32>,
    %c0_i32_13 = arith.constant 0 : i32
    %31 = arith.cmpi eq, %arg1, %c0_i32_13 : i32
    %32 = arith.extui %31 : i1 to i32
    %c0_i32_14 = arith.constant 0 : i32
    %33 = arith.cmpi ne, %32, %c0_i32_14 : i32
    scf.if %33 {
      %c0_15 = arith.constant 0 : index
      %34 = memref.load %arg2[%c0_15] : memref<1xf32, #tpu.memory_space<smem>>
      %c0_16 = arith.constant 0 : index
      %c0_17 = arith.constant 0 : index
      %35 = vector.load %arg6[%c0_16, %c0_17] : memref<16x1xf32, #tpu.memory_space<vmem>>, vector<16x1xf32>
      %cst_18 = arith.constant dense<0.000000e+00> : vector<16xf32>
      %36 = vector.multi_reduction <add>, %35, %cst_18 [1] : vector<16x1xf32> to vector<16xf32>
      %37 = vector.broadcast %34 : f32 to vector<16xf32>
      %38 = arith.mulf %37, %36 : vector<16xf32>
      %39 = vector.shape_cast %38 : vector<16xf32> to vector<1x1x16xf32>
      %c0_19 = arith.constant 0 : index
      %c0_20 = arith.constant 0 : index
      %c0_21 = arith.constant 0 : index
      %40 = vector.load %arg5[%c0_19, %c0_20, %c0_21] : memref<1x1x16xf32, #tpu.memory_space<vmem>>, vector<1x1x16xf32>
      tpu.vector_store %arg5[%c0_19, %c0_20, %c0_21], %39 {strides = array<i32>} : memref<1x1x16xf32, #tpu.memory_space<vmem>>, vector<1x1x16xf32>,
    } else {
    }
    return
  }
  func.func @transform_0(%arg0: i32, %arg1: i32) -> i32 {
    %c0_i32 = arith.constant 0 : i32
    %c0_i32_0 = arith.constant 0 : i32
    return %c0_i32 : i32
  }
  func.func @transform_1(%arg0: i32, %arg1: i32) -> (i32, i32) {
    %c0_i32 = arith.constant 0 : i32
    %c0_i32_0 = arith.constant 0 : i32
    %c0_i32_1 = arith.constant 0 : i32
    return %c0_i32, %c0_i32_0 : i32, i32
  }
  func.func @transform_2(%arg0: i32, %arg1: i32) -> (i32, i32, i32) {
    %c0_i32 = arith.constant 0 : i32
    %c0_i32_0 = arith.constant 0 : i32
    return %arg0, %c0_i32, %arg1 : i32, i32, i32
  }
  func.func @transform_3(%arg0: i32, %arg1: i32) -> (i32, i32, i32) {
    %c0_i32 = arith.constant 0 : i32
    %c0_i32_0 = arith.constant 0 : i32
    %c0_i32_1 = arith.constant 0 : i32
    return %arg0, %c0_i32, %c0_i32_0 : i32, i32, i32
  }
}

module attributes {stable_mosaic.version = 11 : i64} {
  func.func @_linear_kernel(%arg0: i32, %arg1: memref<8x32xbf16, #tpu.memory_space<vmem>>, %arg2: memref<32x128xbf16, #tpu.memory_space<vmem>>, %arg3: memref<1x128xf32, #tpu.memory_space<vmem>>, %arg4: memref<8x128xf32, #tpu.memory_space<vmem>>) attributes {dimension_semantics = [#tpu.dimension_semantics<parallel>], iteration_bounds = array<i64: 1>, scalar_prefetch = 0 : i64, scratch_operands = 0 : i64, tpu.core_type = #tpu.core_type<tc>, window_params = [{transform_indices = @transform_0, window_bounds = array<i64: 8, 32>}, {pipeline_mode = #tpu.pipeline_mode<synchronous>, transform_indices = @transform_1, window_bounds = array<i64: 32, 128>}, {pipeline_mode = #tpu.pipeline_mode<synchronous>, transform_indices = @transform_2, window_bounds = array<i64: 1, 128>}, {transform_indices = @transform_3, window_bounds = array<i64: 8, 128>}]} {
    %c0 = arith.constant 0 : index
    %c0_0 = arith.constant 0 : index
    %0 = vector.load %arg1[%c0, %c0_0] : memref<8x32xbf16, #tpu.memory_space<vmem>>, vector<8x32xbf16>
    %c0_1 = arith.constant 0 : index
    %c0_2 = arith.constant 0 : index
    %1 = vector.load %arg2[%c0_1, %c0_2] : memref<32x128xbf16, #tpu.memory_space<vmem>>, vector<32x128xbf16>
    %cst = arith.constant dense<0.000000e+00> : vector<8x128xf32>
    %2 = tpu.matmul %0, %1, %cst {dimension_numbers = #tpu.dot_dimension_numbers<[1], [0], [0], [1], [0, 0, 1, 1], [], []>} : vector<8x32xbf16>, vector<32x128xbf16>, vector<8x128xf32> -> vector<8x128xf32>
    %c0_3 = arith.constant 0 : index
    %c0_4 = arith.constant 0 : index
    %3 = vector.load %arg3[%c0_3, %c0_4] : memref<1x128xf32, #tpu.memory_space<vmem>>, vector<1x128xf32>
    %4 = vector.broadcast %3 : vector<1x128xf32> to vector<8x128xf32>
    %5 = arith.addf %2, %4 : vector<8x128xf32>
    %c0_5 = arith.constant 0 : index
    %c0_6 = arith.constant 0 : index
    %6 = vector.load %arg4[%c0_5, %c0_6] : memref<8x128xf32, #tpu.memory_space<vmem>>, vector<8x128xf32>
    tpu.vector_store %arg4[%c0_5, %c0_6], %5 {strides = array<i32>} : memref<8x128xf32, #tpu.memory_space<vmem>>, vector<8x128xf32>,
    return
  }
  func.func @transform_0(%arg0: i32) -> (i32, i32) {
    %c0_i32 = arith.constant 0 : i32
    %c0_i32_0 = arith.constant 0 : i32
    return %arg0, %c0_i32 : i32, i32
  }
  func.func @transform_1(%arg0: i32) -> (i32, i32) {
    %c0_i32 = arith.constant 0 : i32
    %c0_i32_0 = arith.constant 0 : i32
    %c0_i32_1 = arith.constant 0 : i32
    return %c0_i32, %c0_i32_0 : i32, i32
  }
  func.func @transform_2(%arg0: i32) -> (i32, i32) {
    %c0_i32 = arith.constant 0 : i32
    %c0_i32_0 = arith.constant 0 : i32
    %c0_i32_1 = arith.constant 0 : i32
    return %c0_i32, %c0_i32_0 : i32, i32
  }
  func.func @transform_3(%arg0: i32) -> (i32, i32) {
    %c0_i32 = arith.constant 0 : i32
    %c0_i32_0 = arith.constant 0 : i32
    return %arg0, %c0_i32 : i32, i32
  }
}

module attributes {stable_mosaic.version = 11 : i64} {
  func.func @_loss_kernel(%arg0: i32, %arg1: memref<8x8xf32, #tpu.memory_space<vmem>>, %arg2: memref<8x16xf32, #tpu.memory_space<vmem>>, %arg3: memref<8x1xi32, #tpu.memory_space<vmem>>, %arg4: memref<1x1xf32, #tpu.memory_space<vmem>>, %arg5: memref<1x1xf32, #tpu.memory_space<vmem>>, %arg6: memref<1x1xf32, #tpu.memory_space<vmem>>) attributes {dimension_semantics = [#tpu.dimension_semantics<arbitrary>], iteration_bounds = array<i64: 1>, scalar_prefetch = 0 : i64, scratch_operands = 2 : i64, tpu.core_type = #tpu.core_type<tc>, window_params = [{transform_indices = @transform_0, window_bounds = array<i64: 8, 8>}, {pipeline_mode = #tpu.pipeline_mode<synchronous>, transform_indices = @transform_1, window_bounds = array<i64: 8, 16>}, {transform_indices = @transform_2, window_bounds = array<i64: 8, 1>}, {pipeline_mode = #tpu.pipeline_mode<synchronous>, transform_indices = @transform_3, window_bounds = array<i64: 1, 1>}]} {
    %c0_i32 = arith.constant 0 : i32
    %0 = arith.cmpi eq, %arg0, %c0_i32 : i32
    %1 = arith.extui %0 : i1 to i32
    %c0_i32_0 = arith.constant 0 : i32
    %2 = arith.cmpi ne, %1, %c0_i32_0 : i32
    scf.if %2 {
      %cst_27 = arith.constant 0.000000e+00 : f32
      %78 = vector.broadcast %cst_27 : f32 to vector<1x1xf32>
      %c0_28 = arith.constant 0 : index
      %c0_29 = arith.constant 0 : index
      %79 = vector.load %arg5[%c0_28, %c0_29] : memref<1x1xf32, #tpu.memory_space<vmem>>, vector<1x1xf32>
      tpu.vector_store %arg5[%c0_28, %c0_29], %78 {strides = array<i32>} : memref<1x1xf32, #tpu.memory_space<vmem>>, vector<1x1xf32>,
      %cst_30 = arith.constant 0.000000e+00 : f32
      %80 = vector.broadcast %cst_30 : f32 to vector<1x1xf32>
      %c0_31 = arith.constant 0 : index
      %c0_32 = arith.constant 0 : index
      %81 = vector.load %arg6[%c0_31, %c0_32] : memref<1x1xf32, #tpu.memory_space<vmem>>, vector<1x1xf32>
      tpu.vector_store %arg6[%c0_31, %c0_32], %80 {strides = array<i32>} : memref<1x1xf32, #tpu.memory_space<vmem>>, vector<1x1xf32>,
    } else {
    }
    %c0 = arith.constant 0 : index
    %c0_1 = arith.constant 0 : index
    %3 = vector.load %arg1[%c0, %c0_1] : memref<8x8xf32, #tpu.memory_space<vmem>>, vector<8x8xf32>
    %c0_2 = arith.constant 0 : index
    %c0_3 = arith.constant 0 : index
    %4 = vector.load %arg3[%c0_2, %c0_3] : memref<8x1xi32, #tpu.memory_space<vmem>>, vector<8x1xi32>
    %5 = tpu.iota {dimensions = array<i32: 1>} : vector<8x8xi32>
    %6 = vector.broadcast %4 : vector<8x1xi32> to vector<8x8xi32>
    %7 = arith.cmpi eq, %5, %6 : vector<8x8xi32>
    %8 = arith.extui %7 : vector<8x8xi1> to vector<8x8xi32>
    %9 = arith.sitofp %8 : vector<8x8xi32> to vector<8x8xf32>
    %c0_i32_4 = arith.constant 0 : i32
    %10 = vector.broadcast %c0_i32_4 : i32 to vector<8x1xi32>
    %11 = arith.cmpi sge, %4, %10 : vector<8x1xi32>
    %12 = arith.extui %11 : vector<8x1xi1> to vector<8x1xi32>
    %13 = arith.sitofp %12 : vector<8x1xi32> to vector<8x1xf32>
    %c0_5 = arith.constant 0 : index
    %c0_6 = arith.constant 0 : index
    %14 = vector.load %arg2[%c0_5, %c0_6] : memref<8x16xf32, #tpu.memory_space<vmem>>, vector<8x16xf32>
    %cst = arith.constant dense<0.000000e+00> : vector<8x16xf32>
    %15 = tpu.matmul %9, %14, %cst {dimension_numbers = #tpu.dot_dimension_numbers<[1], [0], [0], [1], [0, 0, 1, 1], [], []>} : vector<8x8xf32>, vector<8x16xf32>, vector<8x16xf32> -> vector<8x16xf32>
    %16 = vector.extract_strided_slice %15 {offsets = [0, 0], sizes = [8, 8], strides = [1, 1]} : vector<8x16xf32> to vector<8x8xf32>
    %cst_7 = arith.constant 5.000000e-01 : f32
    %17 = vector.broadcast %cst_7 : f32 to vector<8x8xf32>
    %18 = arith.mulf %17, %16 : vector<8x8xf32>
    %19 = arith.addf %3, %18 : vector<8x8xf32>
    %20 = vector.extract_strided_slice %15 {offsets = [0, 8], sizes = [8, 8], strides = [1, 1]} : vector<8x16xf32> to vector<8x8xf32>
    %cst_8 = arith.constant 5.000000e-01 : f32
    %21 = vector.broadcast %cst_8 : f32 to vector<8x8xf32>
    %22 = arith.mulf %21, %20 : vector<8x8xf32>
    %23 = arith.addf %3, %22 : vector<8x8xf32>
    %cst_9 = arith.constant dense<0xFF800000> : vector<8xf32>
    %24 = vector.multi_reduction <maximumf>, %19, %cst_9 [1] : vector<8x8xf32> to vector<8xf32>
    %25 = vector.shape_cast %24 : vector<8xf32> to vector<8x1xf32>
    %26 = vector.broadcast %25 : vector<8x1xf32> to vector<8x8xf32>
    %27 = arith.subf %19, %26 : vector<8x8xf32>
    %28 = math.exp %27 : vector<8x8xf32>
    %cst_10 = arith.constant dense<0.000000e+00> : vector<8xf32>
    %29 = vector.multi_reduction <add>, %28, %cst_10 [1] : vector<8x8xf32> to vector<8xf32>
    %30 = vector.shape_cast %29 : vector<8xf32> to vector<8x1xf32>
    %31 = math.log %30 : vector<8x1xf32>
    %32 = arith.addf %25, %31 : vector<8x1xf32>
    %33 = arith.mulf %19, %9 : vector<8x8xf32>
    %cst_11 = arith.constant dense<0.000000e+00> : vector<8xf32>
    %34 = vector.multi_reduction <add>, %33, %cst_11 [1] : vector<8x8xf32> to vector<8xf32>
    %35 = vector.shape_cast %34 : vector<8xf32> to vector<8x1xf32>
    %c0_12 = arith.constant 0 : index
    %c0_13 = arith.constant 0 : index
    %36 = vector.load %arg5[%c0_12, %c0_13] : memref<1x1xf32, #tpu.memory_space<vmem>>, vector<1x1xf32>
    %37 = arith.subf %32, %35 : vector<8x1xf32>
    %38 = arith.mulf %37, %13 : vector<8x1xf32>
    %39 = vector.shape_cast %38 : vector<8x1xf32> to vector<1x8x1xf32>
    %cst_14 = arith.constant dense<0.000000e+00> : vector<1xf32>
    %40 = vector.multi_reduction <add>, %39, %cst_14 [1, 2] : vector<1x8x1xf32> to vector<1xf32>
    %41 = vector.shape_cast %40 : vector<1xf32> to vector<1x1x1xf32>
    %42 = vector.extract %41[0, 0, 0] : f32 from vector<1x1x1xf32>
    %43 = vector.broadcast %42 : f32 to vector<1x1xf32>
    %44 = arith.addf %36, %43 : vector<1x1xf32>
    %c0_15 = arith.constant 0 : index
    %c0_16 = arith.constant 0 : index
    %45 = vector.load %arg5[%c0_15, %c0_16] : memref<1x1xf32, #tpu.memory_space<vmem>>, vector<1x1xf32>
    tpu.vector_store %arg5[%c0_15, %c0_16], %44 {strides = array<i32>} : memref<1x1xf32, #tpu.memory_space<vmem>>, vector<1x1xf32>,
    %46 = vector.broadcast %32 : vector<8x1xf32> to vector<8x8xf32>
    %47 = arith.subf %19, %46 : vector<8x8xf32>
    %cst_17 = arith.constant dense<0xFF800000> : vector<8xf32>
    %48 = vector.multi_reduction <maximumf>, %23, %cst_17 [1] : vector<8x8xf32> to vector<8xf32>
    %49 = vector.shape_cast %48 : vector<8xf32> to vector<8x1xf32>
    %50 = vector.broadcast %49 : vector<8x1xf32> to vector<8x8xf32>
    %51 = arith.subf %23, %50 : vector<8x8xf32>
    %52 = math.exp %51 : vector<8x8xf32>
    %cst_18 = arith.constant dense<0.000000e+00> : vector<8xf32>
    %53 = vector.multi_reduction <add>, %52, %cst_18 [1] : vector<8x8xf32> to vector<8xf32>
    %54 = vector.shape_cast %53 : vector<8xf32> to vector<8x1xf32>
    %55 = math.log %54 : vector<8x1xf32>
    %56 = arith.addf %49, %55 : vector<8x1xf32>
    %57 = vector.broadcast %56 : vector<8x1xf32> to vector<8x8xf32>
    %58 = arith.subf %23, %57 : vector<8x8xf32>
    %59 = math.exp %58 : vector<8x8xf32>
    %c0_19 = arith.constant 0 : index
    %c0_20 = arith.constant 0 : index
    %60 = vector.load %arg6[%c0_19, %c0_20] : memref<1x1xf32, #tpu.memory_space<vmem>>, vector<1x1xf32>
    %61 = vector.broadcast %56 : vector<8x1xf32> to vector<8x8xf32>
    %62 = arith.subf %23, %61 : vector<8x8xf32>
    %63 = arith.subf %62, %47 : vector<8x8xf32>
    %64 = arith.mulf %59, %63 : vector<8x8xf32>
    %cst_21 = arith.constant dense<0.000000e+00> : vector<8xf32>
    %65 = vector.multi_reduction <add>, %64, %cst_21 [1] : vector<8x8xf32> to vector<8xf32>
    %66 = vector.shape_cast %65 : vector<8xf32> to vector<8x1xf32>
    %67 = arith.mulf %66, %13 : vector<8x1xf32>
    %68 = vector.shape_cast %67 : vector<8x1xf32> to vector<1x8x1xf32>
    %cst_22 = arith.constant dense<0.000000e+00> : vector<1xf32>
    %69 = vector.multi_reduction <add>, %68, %cst_22 [1, 2] : vector<1x8x1xf32> to vector<1xf32>
    %70 = vector.shape_cast %69 : vector<1xf32> to vector<1x1x1xf32>
    %71 = vector.extract %70[0, 0, 0] : f32 from vector<1x1x1xf32>
    %72 = vector.broadcast %71 : f32 to vector<1x1xf32>
    %73 = arith.addf %60, %72 : vector<1x1xf32>
    %c0_23 = arith.constant 0 : index
    %c0_24 = arith.constant 0 : index
    %74 = vector.load %arg6[%c0_23, %c0_24] : memref<1x1xf32, #tpu.memory_space<vmem>>, vector<1x1xf32>
    tpu.vector_store %arg6[%c0_23, %c0_24], %73 {strides = array<i32>} : memref<1x1xf32, #tpu.memory_space<vmem>>, vector<1x1xf32>,
    %c0_i32_25 = arith.constant 0 : i32
    %75 = arith.cmpi eq, %arg0, %c0_i32_25 : i32
    %76 = arith.extui %75 : i1 to i32
    %c0_i32_26 = arith.constant 0 : i32
    %77 = arith.cmpi ne, %76, %c0_i32_26 : i32
    scf.if %77 {
      %c0_27 = arith.constant 0 : index
      %c0_28 = arith.constant 0 : index
      %78 = vector.load %arg5[%c0_27, %c0_28] : memref<1x1xf32, #tpu.memory_space<vmem>>, vector<1x1xf32>
      %cst_29 = arith.constant 8.000000e+00 : f32
      %79 = vector.broadcast %cst_29 : f32 to vector<1x1xf32>
      %80 = arith.divf %78, %79 : vector<1x1xf32>
      %c0_30 = arith.constant 0 : index
      %c0_31 = arith.constant 0 : index
      %81 = vector.load %arg6[%c0_30, %c0_31] : memref<1x1xf32, #tpu.memory_space<vmem>>, vector<1x1xf32>
      %cst_32 = arith.constant 6.400000e+01 : f32
      %82 = vector.broadcast %cst_32 : f32 to vector<1x1xf32>
      %83 = arith.divf %81, %82 : vector<1x1xf32>
      %84 = arith.addf %80, %83 : vector<1x1xf32>
      %c0_33 = arith.constant 0 : index
      %c0_34 = arith.constant 0 : index
      %85 = vector.load %arg4[%c0_33, %c0_34] : memref<1x1xf32, #tpu.memory_space<vmem>>, vector<1x1xf32>
      tpu.vector_store %arg4[%c0_33, %c0_34], %84 {strides = array<i32>} : memref<1x1xf32, #tpu.memory_space<vmem>>, vector<1x1xf32>,
    } else {
    }
    return
  }
  func.func @transform_0(%arg0: i32) -> (i32, i32) {
    %c0_i32 = arith.constant 0 : i32
    %c0_i32_0 = arith.constant 0 : i32
    return %arg0, %c0_i32 : i32, i32
  }
  func.func @transform_1(%arg0: i32) -> (i32, i32) {
    %c0_i32 = arith.constant 0 : i32
    %c0_i32_0 = arith.constant 0 : i32
    %c0_i32_1 = arith.constant 0 : i32
    return %c0_i32, %c0_i32_0 : i32, i32
  }
  func.func @transform_2(%arg0: i32) -> (i32, i32) {
    %c0_i32 = arith.constant 0 : i32
    %c0_i32_0 = arith.constant 0 : i32
    return %arg0, %c0_i32 : i32, i32
  }
  func.func @transform_3(%arg0: i32) -> (i32, i32) {
    %c0_i32 = arith.constant 0 : i32
    %c0_i32_0 = arith.constant 0 : i32
    %c0_i32_1 = arith.constant 0 : i32
    return %c0_i32, %c0_i32_0 : i32, i32
  }
}

</mosaic_0001>

<llo_original>
// kernel: isda_loss_forward.6
$region0: #{isda_loss_forward.6}
  #allocation0 [shape = 'u32[]', space=smem, size = 0x4, offset = 0x4, fixed_abs, tag = 'smem constant byte address 0x4 - core index']
  #allocation1 [shape = 'u32[144,128]{1,0:T(1,128)}', space=vmem, size = 0x12000, scoped, tag = 'internal scratch']
  #allocation2 [shape = 'f32[16,1]{1,0:T(8,128)}', space=vmem, size = 0x2000, scoped, tag = 'scratch operand']
  #allocation3 [shape = 'f32[1]{0:T(128)S(6)}', space=smem, size = 0x200, scoped, tag = 'scoped memory for isda_loss_forward.6']
  %s0 = inlined_call_operand.<no memory space> [shape: f32[1], index: 0, kind: input, shape index: {}]
  %s1 = inlined_call_operand.hbm [shape: f32[16,32], index: 1, kind: input, shape index: {}]
  %s2 = inlined_call_operand.hbm [shape: f32[8,32,32], index: 2, kind: input, shape index: {}]
  %s3 = inlined_call_operand.hbm [shape: f32[8,1,16], index: 3, kind: output, shape index: {}]
  %s4 = sld [smem:[#allocation0]]
  $region61: #{isda_loss_forward.6} parent=0
    _
  %s6 = ssub.s32 1, %s4
  %s7 = scalar_select 0, %s6, %s4
  %8 = sst [smem:[#allocation3]] %s0
  $region1: #{isda_loss_forward.6} parent=0
    #allocation4 [shape = 'u8[8192]{0}', space=vmem, size = 0x2000, scoped, tag = 'input window, operand 1, single buffered']
    #allocation5 [shape = 's32[2]{0}', space=sflag, size = 0x8, scoped, tag = 'scoped memory for isda_loss_forward.6']
    #allocation6 [shape = 's32[2]{0}', space=sflag, size = 0x8, scoped, tag = 'scoped memory for isda_loss_forward.6']
    #allocation7 [shape = 'u8[32768]{0}', space=vmem, size = 0x8000, scoped, tag = 'input window, operand 2']
    #allocation8 [shape = 's32[2]{0}', space=sflag, size = 0x8, scoped, tag = 'scoped memory for isda_loss_forward.6']
    #allocation9 [shape = 'u8[1024]{0}', space=vmem, size = 0x400, scoped, tag = 'output window, operand 0']
    %9 = vsyncpa [#allocation5], 0
    %10 = vsyncpa [#allocation8], 0
    %s11 = scalar_lea.sflag [#allocation8], 1
    %12 = vsyncpa %s11, 0
    %13 = vsyncpa [#allocation6], 0
    %s14 = scalar_lea.sflag [#allocation6], 1
    %15 = vsyncpa %s14, 0
    loop: start=0, step=1, limit=10
    $region2: #{isda_loss_forward.6} parent=1 // loop_pre_header
      _
    $region3: #{isda_loss_forward.6} parent=1 // loop_header
      %s17 = sphi 0, %s21
      %p18 = scmp.ge.s32.totalorder %s17, 10
      %s24 = sphi 0, %s36
      %s25 = sphi 0, %s32
      %s26 = sphi 0, %s24
      %s27 = sphi 0, %s25
      %s28 = sphi 0, %s26
      %s29 = sphi 0, %s27
      %s37 = sphi 0, %s37
      %s39 = sphi 0, %s37
      %s40 = sphi 0, %s39
      %s54 = sphi 0, %s40
      %s58 = sphi 0, %s58
      %s60 = sphi 0, %s58
      %s61 = sphi 0, %s60
      %s75 = sphi 0, %s61
      %s83 = sphi 0, %s85
      %s86 = sphi 0, %s83
      %s87 = sphi 0, %s86
      %s103 = sphi 0, %s87
      %s109 = sphi 0, %s111
      %s112 = sphi 0, %s109
      %s113 = sphi 0, %s112
      %s129 = sphi 0, %s113
    $region4: #{isda_loss_forward.6} parent=1 // loop_header_branch
      %20 = sbr.rel (%p18) target = $region8
    $region5: #{isda_loss_forward.6} parent=1 // loop_body
      %s22 = ssub.s32 %s17, 1
      %s23 = ssub.s32 %s17, 2
      %s30 = sadd.s32 1, %s25
      %p31 = scmp.ge.s32.totalorder %s30, 1
      %s32 = scalar_select %p31, 0, %s30
      %s33 = sadd.s32 1, %s24
      %s34 = scalar_select %p31, %s33, %s24
      %p35 = scmp.ge.s32.totalorder %s34, 8
      %s36 = scalar_select %p35, 0, %s34
      %s38 = sadd.s32 %s37, 1
      %p41 = scmp.eq.s32.totalorder %s17, 7
      %p42 = scmp.ne.s32.totalorder %s37, %s39
      %p43 = scmp.eq.s32.totalorder %s17, 0
      %p44 = por %p42, %p43
      %p45 = scmp.ne.s32.totalorder %s37, %s39
      %p46 = scmp.eq.s32.totalorder %s22, 7
      %p47 = por %p45, %p46
      %p48 = scmp.ne.s32.totalorder %s39, %s40
      %p49 = scmp.eq.s32.totalorder %s22, 0
      %p50 = por %p48, %p49
      %p51 = scmp.ne.s32.totalorder %s39, %s40
      %p52 = scmp.eq.s32.totalorder %s23, 7
      %p53 = por %p51, %p52
      %p55 = scmp.ne.s32.totalorder %s40, %s54
      %p56 = scmp.eq.s32.totalorder %s23, 0
      %p57 = por %p55, %p56
      %s59 = sadd.s32 %s58, 1
      %p62 = scmp.eq.s32.totalorder %s17, 7
      %p63 = scmp.ne.s32.totalorder %s58, %s60
      %p64 = scmp.eq.s32.totalorder %s17, 0
      %p65 = por %p63, %p64
      %p66 = scmp.ne.s32.totalorder %s58, %s60
      %p67 = scmp.eq.s32.totalorder %s22, 7
      %p68 = por %p66, %p67
      %p69 = scmp.ne.s32.totalorder %s60, %s61
      %p70 = scmp.eq.s32.totalorder %s22, 0
      %p71 = por %p69, %p70
      %p72 = scmp.ne.s32.totalorder %s60, %s61
      %p73 = scmp.eq.s32.totalorder %s23, 7
      %p74 = por %p72, %p73
      %p76 = scmp.ne.s32.totalorder %s61, %s75
      %p77 = scmp.eq.s32.totalorder %s23, 0
      %p78 = por %p76, %p77
      %s79 = ssub.s32 %s24, %s36
      %s80 = ssub.s32 %s25, %s32
      %s81 = sor.u32 %s79, %s80
      %p82 = scmp.eq.s32.totalorder %s81, 0
      %s84 = sadd.s32 %s83, 1
      %s85 = scalar_select %p82, %s83, %s84
      %p88 = pneg %p82
      %p89 = scmp.eq.s32.totalorder %s17, 7
      %p90 = por %p88, %p89
      %p91 = scmp.ne.s32.totalorder %s83, %s86
      %p92 = scmp.eq.s32.totalorder %s17, 0
      %p93 = por %p91, %p92
      %p94 = scmp.ne.s32.totalorder %s83, %s86
      %p95 = scmp.eq.s32.totalorder %s22, 7
      %p96 = por %p94, %p95
      %p97 = scmp.ne.s32.totalorder %s86, %s87
      %p98 = scmp.eq.s32.totalorder %s22, 0
      %p99 = por %p97, %p98
      %p100 = scmp.ne.s32.totalorder %s86, %s87
      %p101 = scmp.eq.s32.totalorder %s23, 7
      %p102 = por %p100, %p101
      %p104 = scmp.ne.s32.totalorder %s87, %s103
      %p105 = scmp.eq.s32.totalorder %s23, 0
      %p106 = por %p104, %p105
      %s107 = ssub.s32 %s24, %s36
      %p108 = scmp.eq.s32.totalorder %s107, 0
      %s110 = sadd.s32 %s109, 1
      %s111 = scalar_select %p108, %s109, %s110
      %p114 = pneg %p108
      %p115 = scmp.eq.s32.totalorder %s17, 7
      %p116 = por %p114, %p115
      %p117 = scmp.ne.s32.totalorder %s109, %s112
      %p118 = scmp.eq.s32.totalorder %s17, 0
      %p119 = por %p117, %p118
      %p120 = scmp.ne.s32.totalorder %s109, %s112
      %p121 = scmp.eq.s32.totalorder %s22, 7
      %p122 = por %p120, %p121
      %p123 = scmp.ne.s32.totalorder %s112, %s113
      %p124 = scmp.eq.s32.totalorder %s22, 0
      %p125 = por %p123, %p124
      %p126 = scmp.ne.s32.totalorder %s112, %s113
      %p127 = scmp.eq.s32.totalorder %s23, 7
      %p128 = por %p126, %p127
      %p130 = scmp.ne.s32.totalorder %s113, %s129
      %p131 = scmp.eq.s32.totalorder %s23, 0
      %p132 = por %p130, %p131
      %p133 = scmp.le.s32.totalorder 1, %s17
      %p134 = scmp.lt.s32.totalorder %s17, 9
      %p135 = pnand %p133, %p134
      %p136 = pneg %p135
      // Predicated region
      $region9: #{isda_loss_forward.6} parent=5 // pred_check
        _
      $region10: #{isda_loss_forward.6} parent=5 // pred_check_branch
        %138 = sbr.rel (%p135) target = $region12
      $region11: #{isda_loss_forward.6} parent=5 // pred_region
        %s139 = ssub.s32 %s17, 1
        // Predicated region
        $region13: #{isda_loss_forward.6} parent=11 // pred_check
          %p140 = pneg %p50
        $region14: #{isda_loss_forward.6} parent=11 // pred_check_branch
          %142 = sbr.rel (%p140) target = $region16
        $region15: #{isda_loss_forward.6} parent=11 // pred_region
          _
        $region16: #{isda_loss_forward.6} parent=11 // pred_fallthru
          _
        // Predicated region
        $region17: #{isda_loss_forward.6} parent=11 // pred_check
          %p143 = pneg %p71
        $region18: #{isda_loss_forward.6} parent=11 // pred_check_branch
          %145 = sbr.rel (%p143) target = $region20
        $region19: #{isda_loss_forward.6} parent=11 // pred_region
          %s147 = ssub.s32 256, 256
          %148 = vsyncadd [#allocation5], %s147
          %s149 = sshll.u32 [#allocation4], 4
          %s150 = int_to_ptr.vmem [resolvable:$true] %s149
          %155 = dma.hbm_to_vmem [thread:$0]  %s1, 256, %s150, [#allocation5], 128, 128, 8
        $region20: #{isda_loss_forward.6} parent=11 // pred_fallthru
          _
      $region12: #{isda_loss_forward.6} parent=5 // pred_fallthru
        _
      %p156 = scmp.lt.s32.totalorder %s17, 8
      // Predicated region
      $region21: #{isda_loss_forward.6} parent=5 // pred_check
        %p157 = pneg %p156
      $region22: #{isda_loss_forward.6} parent=5 // pred_check_branch
        %159 = sbr.rel (%p157) target = $region24
      $region23: #{isda_loss_forward.6} parent=5 // pred_region
        // Predicated region
        $region25: #{isda_loss_forward.6} parent=23 // pred_check
          %p160 = pneg %p93
        $region26: #{isda_loss_forward.6} parent=23 // pred_check_branch
          %162 = sbr.rel (%p160) target = $region28
        $region27: #{isda_loss_forward.6} parent=23 // pred_region
          %s163 = sand.u32 %s83, 1
          %s164 = scalar_lea.sflag [#allocation8], %s163
          %s165 = sand.u32 %s83, 1
          %s166 = smul.addr %s165, 32
          %s167 = scalar_lea.vmem [#allocation7], %s166
          %s169 = ssub.s32 512, 512
          %170 = vsyncadd %s164, %s169
          %s171 = smul.addr %s24, 4
          %s172 = sadd.s32 %s25, %s171
          %s173 = smul.addr %s172, 128
          %s174 = scalar_lea.hbm %s2, %s173
          %s175 = sshll.u32 %s167, 4
          %s176 = int_to_ptr.vmem [resolvable:$true] %s175
          %181 = dma.hbm_to_vmem [thread:$0]  %s174, 512, %s176, %s164, 128, 128, 8
        $region28: #{isda_loss_forward.6} parent=23 // pred_fallthru
          _
      $region24: #{isda_loss_forward.6} parent=5 // pred_fallthru
        _
      %p182 = scmp.le.s32.totalorder 1, %s17
      %p183 = scmp.lt.s32.totalorder %s17, 9
      %p184 = pnand %p182, %p183
      %p185 = pneg %p184
      // Predicated region
      $region29: #{isda_loss_forward.6} parent=5 // pred_check
        _
      $region30: #{isda_loss_forward.6} parent=5 // pred_check_branch
        %187 = sbr.rel (%p184) target = $region32
      $region31: #{isda_loss_forward.6} parent=5 // pred_region
        %s188 = ssub.s32 %s17, 1
        // Predicated region
        $region33: #{isda_loss_forward.6} parent=31 // pred_check
          %p189 = pneg %p71
        $region34: #{isda_loss_forward.6} parent=31 // pred_check_branch
          %191 = sbr.rel (%p189) target = $region36
        $region35: #{isda_loss_forward.6} parent=31 // pred_region
          %192 = dma.done [#allocation5], 256
        $region36: #{isda_loss_forward.6} parent=31 // pred_fallthru
          _
        %s193 = sand.u32 %s86, 1
        %s194 = scalar_lea.sflag [#allocation8], %s193
        %s195 = sand.u32 %s86, 1
        %s196 = smul.addr %s195, 32
        %s197 = scalar_lea.vmem [#allocation7], %s196
        // Predicated region
        $region37: #{isda_loss_forward.6} parent=31 // pred_check
          %p198 = pneg %p99
        $region38: #{isda_loss_forward.6} parent=31 // pred_check_branch
          %200 = sbr.rel (%p198) target = $region40
        $region39: #{isda_loss_forward.6} parent=31 // pred_region
          %201 = dma.done %s194, 512
        $region40: #{isda_loss_forward.6} parent=31 // pred_fallthru
          _
        %p202 = pneg %p50
        %p203 = pneg %p47
        %p204 = pneg %p71
        %p205 = pneg %p68
        %s206 = sand.u32 %s86, 1
        %s207 = scalar_lea.sflag [#allocation8], %s206
        %s208 = sand.u32 %s86, 1
        %s209 = smul.addr %s208, 32
        %s210 = scalar_lea.vmem [#allocation7], %s209
        %p211 = pneg %p99
        %p212 = pneg %p96
        %p213 = pneg %p125
        %p214 = pneg %p122
        %s215 = sand.u32 %s112, 1
        %s216 = scalar_lea.sflag [#allocation6], %s215
        %s217 = sand.u32 %s112, 1
        %s218 = scalar_lea.vmem [#allocation9], %s217
        %p220 = scmp.eq.s32.totalorder %s27, 0
        // Predicated region
        $region41: #{isda_loss_forward.6} parent=31 // pred_check
          %p221 = pneg %p220
        $region42: #{isda_loss_forward.6} parent=31 // pred_check_branch
          %223 = sbr.rel (%p221) target = $region44
        $region43: #{isda_loss_forward.6} parent=31 // pred_region
          %vm224 = vcmask 7168
          %225 = vst.msk [vmem:[#allocation2] sm:$0xff] %vm224, 0.0
          %226 = vst.msk [vmem:[#allocation2 + $0x8] sm:$0xff] %vm224, 0.0
        $region44: #{isda_loss_forward.6} parent=31 // pred_fallthru
          _
        %v227 = vld [vmem:[#allocation4] sm:$0xff]
        %v228 = vld [vmem:[#allocation4 + $0x8] sm:$0xff]
        %s229 = scalar_lea.vmem [#allocation4], %s26
        %v230 = vld [vmem:[%s229] sm:$0x1]
        %s231 = sadd.s32 %s26, 8
        %s232 = scalar_lea.vmem [#allocation4], %s231
        %v233 = vld [vmem:[%s232] sm:$0x1]
        %v234 = vlaneseq
        %v235 = vshrl.u32 %v234, 7
        %v236 = vadd.s32 %v235, 8
        %vm237 = vcmp.lt.s32.totalorder %v235, 8
        %vm238 = vcmp.lt.s32.totalorder %v236, 8
        %v239 = vsel %vm237, 1, 0
        %v240 = vsel %vm238, 1, 0
        %vm241 = vcmp.eq.s32.totalorder %v239, 1
        %vm242 = vcmp.eq.s32.totalorder %v240, 1
        %v243 = vlaneseq
        %v244 = vshrl.u32 %v243, 7
        %v245 = vsub.s32 0, %v244
        %v246 = vrot.slane %v230, %v245
        %v247 = vlaneseq
        %v248 = vshrl.u32 %v247, 7
        %v249 = vsub.s32 0, %v248
        %v250 = vrot.slane %v233, %v249
        %v251 = vsel %vm241, %v246, %v250
        %v252 = vsel %vm242, %v246, %v250
        %v253 = vsub.f32 %v227, %v251
        %v254 = vsub.f32 %v228, %v252
        %v255 = vpack.c.bf16 %v254, %v253
        %v256 = vld [vmem:[%s197] sm:$0xff]
        %v257 = vld [vmem:[%s197 + $0x8] sm:$0xff]
        %v258 = vld [vmem:[%s197 + $0x10] sm:$0xff]
        %v259 = vld [vmem:[%s197 + $0x18] sm:$0xff]
        %v260 = vpack.c.bf16 %v257, %v256
        %v261 = vpack.c.bf16 %v259, %v258
        %vm262 = vcmask 261120
        %v264 = vsel %vm262, %v255, 0
        %266 = vmatprep.subr.bf16.mxu0 0
        %267 = vmatpush1.bf16.msra.mxu0 %v260
        %268 = vmatprep.subr.bf16.mxu0 0
        %269 = vmatpush1.bf16.msra.mxu0 %v261
        %270 = vmatprep.subr.bf16.mxu0 0
        %271 = vmatpush1.bf16.msra.mxu0 0
        %272 = vmatprep.subr.bf16.mxu0 0
        %273 = vmatpush1.bf16.msra.mxu0 0
        %274 = vmatprep.subr.bf16.mxu0 0
        %275 = vmatpush1.bf16.msra.mxu0 0
        %276 = vmatprep.subr.bf16.mxu0 0
        %277 = vmatpush1.bf16.msra.mxu0 0
        %278 = vmatprep.subr.bf16.mxu0 0
        %279 = vmatpush1.bf16.msra.mxu0 0
        %280 = vmatprep.subr.bf16.mxu0 0
        %281 = vmatpush1.bf16.msra.mxu0 0
        %282 = vmatprep.subr.bf16.mxu0 0
        %283 = vmatpush1.bf16.msra.mxu0 0
        %284 = vmatprep.subr.bf16.mxu0 0
        %285 = vmatpush1.bf16.msra.mxu0 0
        %286 = vmatprep.subr.bf16.mxu0 0
        %287 = vmatpush1.bf16.msra.mxu0 0
        %288 = vmatprep.subr.bf16.mxu0 0
        %289 = vmatpush1.bf16.msra.mxu0 0
        %290 = vmatprep.subr.bf16.mxu0 0
        %291 = vmatpush1.bf16.msra.mxu0 0
        %292 = vmatprep.subr.bf16.mxu0 0
        %293 = vmatpush1.bf16.msra.mxu0 0
        %294 = vmatprep.subr.bf16.mxu0 0
        %295 = vmatpush1.bf16.msra.mxu0 0
        %296 = vmatprep.subr.bf16.mxu0 0
        %297 = vmatpush1.bf16.msra.mxu0 0
        %298 = vmatprep.mubr.bf16.mxu0 0
        %299 = vmatmul.mubr.bf16.gmra.mrb[0].mxu0 %v264
        %v300 = vpop.f32.mrb[0].mxu0
        %v301 = vadd.f32 0.0, %v300
        %v302 = vpop.f32.mrb[0].mxu0
        %v303 = vpop.f32.mrb[0].mxu0
        %v304 = vadd.f32 0.0, %v303
        %v305 = vpop.f32.mrb[0].mxu0
        %306 = vdwg.mxu0
        %v307 = vld [vmem:[#allocation2] sm:$0xff]
        %v308 = vld [vmem:[#allocation2 + $0x8] sm:$0xff]
        %v309 = vmul.f32 %v301, %v253
        %v310 = vmul.f32 %v304, %v254
        %v311 = vsel %vm262, %v309, 0.0
        %312 = vadd.xlane.f32.xlu0 %v311
        %v313 = vpop.xlane.xlu0 %312
        %v314 = vsel %vm262, %v310, 0.0
        %315 = vadd.xlane.f32.xlu0 %v314
        %v316 = vpop.xlane.xlu0 %315
        %v317 = vadd.f32 %v307, %v313
        %v318 = vadd.f32 %v308, %v316
        %vm319 = vcmask 7168
        %320 = vst.msk [vmem:[#allocation2] sm:$0xff] %vm319, %v317
        %321 = vst.msk [vmem:[#allocation2 + $0x8] sm:$0xff] %vm319, %v318
        // Predicated region
        $region45: #{isda_loss_forward.6} parent=31 // pred_check
          %p322 = pneg %p220
        $region46: #{isda_loss_forward.6} parent=31 // pred_check_branch
          %324 = sbr.rel (%p322) target = $region48
        $region47: #{isda_loss_forward.6} parent=31 // pred_region
          %s325 = sld [smem:[#allocation3]]
          %v326 = vld [vmem:[#allocation2] sm:$0xff]
          %v327 = vld [vmem:[#allocation2 + $0x8] sm:$0xff]
          %v328 = vadd.f32 %v326, 0.0
          %v329 = vadd.f32 %v327, 0.0
          %v330 = vstv %s325
          %v331 = vmul.f32 %v330, %v328
          %v332 = vmul.f32 %v330, %v329
          %335 = vset.pattern.permute.xlu0 0
          %336 = vperm.xlu0 %335, %v331
          %v337 = vpop.permute.xlu0 %336
          %338 = vset.pattern.permute.xlu0 0
          %339 = vperm.xlu0 %338, %v332
          %v340 = vpop.permute.xlu0 %339
          %v341 = vlaneseq
          %v342 = vand.u32 %v341, 127
          %v343 = vlaneseq
          %v344 = vshrl.u32 %v343, 7
          %v345 = vsub.s32 %v342, %v344
          %v346 = vrot.slane %v337, %v345
          %v347 = vadd.s32 %v342, 4294967288
          %v348 = vlaneseq
          %v349 = vshrl.u32 %v348, 7
          %v350 = vsub.s32 %v347, %v349
          %v351 = vrot.slane %v340, %v350
          %vm352 = vcmask 130112
          %v353 = vsel %vm352, %v351, %v346
          %vm355 = vcmask 122880
          %356 = vst.msk [vmem:[%s218] sm:$0x1] %vm355, %v353
        $region48: #{isda_loss_forward.6} parent=31 // pred_fallthru
          _
        %s357 = sand.u32 %s112, 1
        %s358 = scalar_lea.sflag [#allocation6], %s357
        %s359 = sand.u32 %s112, 1
        %s360 = scalar_lea.vmem [#allocation9], %s359
        // Predicated region
        $region49: #{isda_loss_forward.6} parent=31 // pred_check
          %p361 = pneg %p122
        $region50: #{isda_loss_forward.6} parent=31 // pred_check_branch
          %363 = sbr.rel (%p361) target = $region52
        $region51: #{isda_loss_forward.6} parent=31 // pred_region
          %s365 = ssub.s32 16, 16
          %366 = vsyncadd %s358, %s365
          %s367 = smul.addr %s26, 16
          %s368 = scalar_lea.hbm %s3, %s367
          %s370 = sshll.u32 %s360, 4
          %s371 = int_to_ptr.vmem [resolvable:$true] %s370
          %373 = dma.vmem_to_hbm [thread:$0]  %s371, 16, %s368, %s358
        $region52: #{isda_loss_forward.6} parent=31 // pred_fallthru
          _
      $region32: #{isda_loss_forward.6} parent=5 // pred_fallthru
        _
      %p374 = scmp.le.s32.totalorder 2, %s17
      // Predicated region
      $region53: #{isda_loss_forward.6} parent=5 // pred_check
        %p375 = pneg %p374
      $region54: #{isda_loss_forward.6} parent=5 // pred_check_branch
        %377 = sbr.rel (%p375) target = $region56
      $region55: #{isda_loss_forward.6} parent=5 // pred_region
        %s378 = ssub.s32 %s17, 2
        // Predicated region
        $region57: #{isda_loss_forward.6} parent=55 // pred_check
          %p379 = pneg %p128
        $region58: #{isda_loss_forward.6} parent=55 // pred_check_branch
          %381 = sbr.rel (%p379) target = $region60
        $region59: #{isda_loss_forward.6} parent=55 // pred_region
          %s382 = sand.u32 %s113, 1
          %s383 = scalar_lea.sflag [#allocation6], %s382
          %s384 = sand.u32 %s113, 1
          %s385 = scalar_lea.vmem [#allocation9], %s384
          %386 = dma.done %s383, 16
        $region60: #{isda_loss_forward.6} parent=55 // pred_fallthru
          _
      $region56: #{isda_loss_forward.6} parent=5 // pred_fallthru
        _
    $region6: #{isda_loss_forward.6} parent=1 // loop_footer
      %s21 = sadd.s32 1, %s17
    $region7: #{isda_loss_forward.6} parent=1 // loop_footer_branch
      %16 = sbr.rel target = $region3
    $region8: #{isda_loss_forward.6} parent=1 // loop_exit
      _
    %387 = vsyncpa [#allocation5], 1
    %s388 = scalar_lea.sflag [#allocation5], 1
    %389 = vsyncpa %s388, 1
    %390 = vsyncpa [#allocation8], 1
    %s391 = scalar_lea.sflag [#allocation8], 1
    %392 = vsyncpa %s391, 1
    %393 = vsyncpa [#allocation6], 1
    %s394 = scalar_lea.sflag [#allocation6], 1
    %395 = vsyncpa %s394, 1

// kernel: isda_loss_forward.5
$region0: #{isda_loss_forward.5}
  #allocation0 [shape = 'u32[]', space=smem, size = 0x4, offset = 0x4, fixed_abs, tag = 'smem constant byte address 0x4 - core index']
  #allocation1 [shape = 'u32[144,128]{1,0:T(1,128)}', space=vmem, size = 0x12000, scoped, tag = 'internal scratch']
  #allocation2 [shape = 'bf16[16,32]{1,0:T(16,128)(2,1)}', space=vmem, size = 0x1000, scoped, tag = 'scratch operand']
  #allocation3 [shape = 'f32[1,32]{1,0:T(1,128)}', space=vmem, size = 0x200, scoped, tag = 'scratch operand']
  #allocation4 [shape = 'f32[1,1]{1,0:T(1,128)}', space=vmem, size = 0x200, scoped, tag = 'scratch operand']
  #allocation5 [shape = 'f32[1,1]{1,0:T(1,128)}', space=vmem, size = 0x200, scoped, tag = 'scratch operand']
  %s0 = inlined_call_operand.hbm [shape: s32[16,1], index: 0, kind: input, shape index: {}]
  %s1 = inlined_call_operand.hbm [shape: f32[16,32], index: 1, kind: input, shape index: {}]
  %s2 = inlined_call_operand.hbm [shape: f32[8,1,32], index: 2, kind: input, shape index: {}]
  %s3 = inlined_call_operand.hbm [shape: f32[8,32,32], index: 3, kind: input, shape index: {}, may-alias: {3,5}]
  %s4 = inlined_call_operand.hbm [shape: f32[8], index: 4, kind: input, shape index: {}]
  %s5 = inlined_call_operand.hbm [shape: f32[8,32,32], index: 5, kind: output, shape index: {0}, may-alias: {3,5}]
  %s6 = inlined_call_operand.hbm [shape: f32[8,1,32], index: 6, kind: output, shape index: {1}]
  %7 = xla_tuple %s5, %s6
  %s8 = sld [smem:[#allocation0]]
  $region85: #{isda_loss_forward.5} parent=0
    _
  %s10 = ssub.s32 1, %s8
  %s11 = scalar_select 0, %s10, %s8
  $region1: #{isda_loss_forward.5} parent=0
    #allocation6 [shape = 'u8[8192]{0}', space=vmem, size = 0x2000, scoped, tag = 'input window, operand 0, single buffered']
    #allocation7 [shape = 's32[2]{0}', space=sflag, size = 0x8, scoped, tag = 'scoped memory for isda_loss_forward.5']
    #allocation8 [shape = 's32[2]{0}', space=sflag, size = 0x8, scoped, tag = 'scoped memory for isda_loss_forward.5']
    #allocation9 [shape = 's32[2]{0}', space=sflag, size = 0x8, scoped, tag = 'scoped memory for isda_loss_forward.5']
    #allocation10 [shape = 'u8[8192]{0}', space=vmem, size = 0x2000, scoped, tag = 'input window, operand 1, single buffered']
    #allocation11 [shape = 's32[1]{0}', space=sflag, size = 0x4, scoped, tag = 'scoped memory for isda_loss_forward.5']
    #allocation12 [shape = 'u8[1024]{0}', space=vmem, size = 0x400, scoped, tag = 'input window, operand 2']
    #allocation13 [shape = 'u8[32768]{0}', space=vmem, size = 0x8000, scoped, tag = 'input window, operand 3']
    #allocation14 [shape = 'u8[512]{0}', space=smem, size = 0x200, scoped, tag = 'input window, operand 4, single buffered']
    #allocation15 [shape = 'u8[32768]{0}', space=vmem, size = 0x8000, scoped, tag = 'output window, operand 0']
    #allocation16 [shape = 'u8[1024]{0}', space=vmem, size = 0x400, scoped, tag = 'output window, operand 1']
    #allocation17 [shape = 's32[2]{0}', space=sflag, size = 0x8, scoped, tag = 'scoped memory for isda_loss_forward.5']
    %12 = vsyncpa [#allocation7], 0
    %13 = vsyncpa [#allocation11], 0
    %14 = vsyncpa [#allocation9], 0
    %15 = vsyncpa [#allocation8], 0
    %s16 = scalar_lea.sflag [#allocation8], 1
    %17 = vsyncpa %s16, 0
    %18 = vsyncpa [#allocation17], 0
    %s19 = scalar_lea.sflag [#allocation17], 1
    %20 = vsyncpa %s19, 0
    loop: start=0, step=1, limit=10
    $region2: #{isda_loss_forward.5} parent=1 // loop_pre_header
      _
    $region3: #{isda_loss_forward.5} parent=1 // loop_header
      %s22 = sphi 0, %s26
      %p23 = scmp.ge.s32.totalorder %s22, 10
      %s29 = sphi 0, %s41
      %s30 = sphi 0, %s37
      %s31 = sphi 0, %s29
      %s32 = sphi 0, %s30
      %s33 = sphi 0, %s31
      %s34 = sphi 0, %s32
      %s42 = sphi 0, %s42
      %s44 = sphi 0, %s42
      %s45 = sphi 0, %s44
      %s59 = sphi 0, %s45
      %s63 = sphi 0, %s63
      %s65 = sphi 0, %s63
      %s66 = sphi 0, %s65
      %s80 = sphi 0, %s66
      %s86 = sphi 0, %s88
      %s89 = sphi 0, %s86
      %s90 = sphi 0, %s89
      %s106 = sphi 0, %s90
      %s114 = sphi 0, %s116
      %s117 = sphi 0, %s114
      %s118 = sphi 0, %s117
      %s134 = sphi 0, %s118
      %s138 = sphi 0, %s138
      %s140 = sphi 0, %s138
      %s141 = sphi 0, %s140
      %s155 = sphi 0, %s141
      %s163 = sphi 0, %s165
      %s166 = sphi 0, %s163
      %s167 = sphi 0, %s166
      %s183 = sphi 0, %s167
      %s189 = sphi 0, %s191
      %s192 = sphi 0, %s189
      %s193 = sphi 0, %s192
      %s209 = sphi 0, %s193
    $region4: #{isda_loss_forward.5} parent=1 // loop_header_branch
      %25 = sbr.rel (%p23) target = $region8
    $region5: #{isda_loss_forward.5} parent=1 // loop_body
      %s27 = ssub.s32 %s22, 1
      %s28 = ssub.s32 %s22, 2
      %s35 = sadd.s32 1, %s30
      %p36 = scmp.ge.s32.totalorder %s35, 1
      %s37 = scalar_select %p36, 0, %s35
      %s38 = sadd.s32 1, %s29
      %s39 = scalar_select %p36, %s38, %s29
      %p40 = scmp.ge.s32.totalorder %s39, 8
      %s41 = scalar_select %p40, 0, %s39
      %s43 = sadd.s32 %s42, 1
      %p46 = scmp.eq.s32.totalorder %s22, 7
      %p47 = scmp.ne.s32.totalorder %s42, %s44
      %p48 = scmp.eq.s32.totalorder %s22, 0
      %p49 = por %p47, %p48
      %p50 = scmp.ne.s32.totalorder %s42, %s44
      %p51 = scmp.eq.s32.totalorder %s27, 7
      %p52 = por %p50, %p51
      %p53 = scmp.ne.s32.totalorder %s44, %s45
      %p54 = scmp.eq.s32.totalorder %s27, 0
      %p55 = por %p53, %p54
      %p56 = scmp.ne.s32.totalorder %s44, %s45
      %p57 = scmp.eq.s32.totalorder %s28, 7
      %p58 = por %p56, %p57
      %p60 = scmp.ne.s32.totalorder %s45, %s59
      %p61 = scmp.eq.s32.totalorder %s28, 0
      %p62 = por %p60, %p61
      %s64 = sadd.s32 %s63, 1
      %p67 = scmp.eq.s32.totalorder %s22, 7
      %p68 = scmp.ne.s32.totalorder %s63, %s65
      %p69 = scmp.eq.s32.totalorder %s22, 0
      %p70 = por %p68, %p69
      %p71 = scmp.ne.s32.totalorder %s63, %s65
      %p72 = scmp.eq.s32.totalorder %s27, 7
      %p73 = por %p71, %p72
      %p74 = scmp.ne.s32.totalorder %s65, %s66
      %p75 = scmp.eq.s32.totalorder %s27, 0
      %p76 = por %p74, %p75
      %p77 = scmp.ne.s32.totalorder %s65, %s66
      %p78 = scmp.eq.s32.totalorder %s28, 7
      %p79 = por %p77, %p78
      %p81 = scmp.ne.s32.totalorder %s66, %s80
      %p82 = scmp.eq.s32.totalorder %s28, 0
      %p83 = por %p81, %p82
      %s84 = ssub.s32 %s29, %s41
      %p85 = scmp.eq.s32.totalorder %s84, 0
      %s87 = sadd.s32 %s86, 1
      %s88 = scalar_select %p85, %s86, %s87
      %p91 = pneg %p85
      %p92 = scmp.eq.s32.totalorder %s22, 7
      %p93 = por %p91, %p92
      %p94 = scmp.ne.s32.totalorder %s86, %s89
      %p95 = scmp.eq.s32.totalorder %s22, 0
      %p96 = por %p94, %p95
      %p97 = scmp.ne.s32.totalorder %s86, %s89
      %p98 = scmp.eq.s32.totalorder %s27, 7
      %p99 = por %p97, %p98
      %p100 = scmp.ne.s32.totalorder %s89, %s90
      %p101 = scmp.eq.s32.totalorder %s27, 0
      %p102 = por %p100, %p101
      %p103 = scmp.ne.s32.totalorder %s89, %s90
      %p104 = scmp.eq.s32.totalorder %s28, 7
      %p105 = por %p103, %p104
      %p107 = scmp.ne.s32.totalorder %s90, %s106
      %p108 = scmp.eq.s32.totalorder %s28, 0
      %p109 = por %p107, %p108
      %s110 = ssub.s32 %s29, %s41
      %s111 = ssub.s32 %s30, %s37
      %s112 = sor.u32 %s110, %s111
      %p113 = scmp.eq.s32.totalorder %s112, 0
      %s115 = sadd.s32 %s114, 1
      %s116 = scalar_select %p113, %s114, %s115
      %p119 = pneg %p113
      %p120 = scmp.eq.s32.totalorder %s22, 7
      %p121 = por %p119, %p120
      %p122 = scmp.ne.s32.totalorder %s114, %s117
      %p123 = scmp.eq.s32.totalorder %s22, 0
      %p124 = por %p122, %p123
      %p125 = scmp.ne.s32.totalorder %s114, %s117
      %p126 = scmp.eq.s32.totalorder %s27, 7
      %p127 = por %p125, %p126
      %p128 = scmp.ne.s32.totalorder %s117, %s118
      %p129 = scmp.eq.s32.totalorder %s27, 0
      %p130 = por %p128, %p129
      %p131 = scmp.ne.s32.totalorder %s117, %s118
      %p132 = scmp.eq.s32.totalorder %s28, 7
      %p133 = por %p131, %p132
      %p135 = scmp.ne.s32.totalorder %s118, %s134
      %p136 = scmp.eq.s32.totalorder %s28, 0
      %p137 = por %p135, %p136
      %s139 = sadd.s32 %s138, 1
      %p142 = scmp.eq.s32.totalorder %s22, 7
      %p143 = scmp.ne.s32.totalorder %s138, %s140
      %p144 = scmp.eq.s32.totalorder %s22, 0
      %p145 = por %p143, %p144
      %p146 = scmp.ne.s32.totalorder %s138, %s140
      %p147 = scmp.eq.s32.totalorder %s27, 7
      %p148 = por %p146, %p147
      %p149 = scmp.ne.s32.totalorder %s140, %s141
      %p150 = scmp.eq.s32.totalorder %s27, 0
      %p151 = por %p149, %p150
      %p152 = scmp.ne.s32.totalorder %s140, %s141
      %p153 = scmp.eq.s32.totalorder %s28, 7
      %p154 = por %p152, %p153
      %p156 = scmp.ne.s32.totalorder %s141, %s155
      %p157 = scmp.eq.s32.totalorder %s28, 0
      %p158 = por %p156, %p157
      %s159 = ssub.s32 %s29, %s41
      %s160 = ssub.s32 %s30, %s37
      %s161 = sor.u32 %s159, %s160
      %p162 = scmp.eq.s32.totalorder %s161, 0
      %s164 = sadd.s32 %s163, 1
      %s165 = scalar_select %p162, %s163, %s164
      %p168 = pneg %p162
      %p169 = scmp.eq.s32.totalorder %s22, 7
      %p170 = por %p168, %p169
      %p171 = scmp.ne.s32.totalorder %s163, %s166
      %p172 = scmp.eq.s32.totalorder %s22, 0
      %p173 = por %p171, %p172
      %p174 = scmp.ne.s32.totalorder %s163, %s166
      %p175 = scmp.eq.s32.totalorder %s27, 7
      %p176 = por %p174, %p175
      %p177 = scmp.ne.s32.totalorder %s166, %s167
      %p178 = scmp.eq.s32.totalorder %s27, 0
      %p179 = por %p177, %p178
      %p180 = scmp.ne.s32.totalorder %s166, %s167
      %p181 = scmp.eq.s32.totalorder %s28, 7
      %p182 = por %p180, %p181
      %p184 = scmp.ne.s32.totalorder %s167, %s183
      %p185 = scmp.eq.s32.totalorder %s28, 0
      %p186 = por %p184, %p185
      %s187 = ssub.s32 %s29, %s41
      %p188 = scmp.eq.s32.totalorder %s187, 0
      %s190 = sadd.s32 %s189, 1
      %s191 = scalar_select %p188, %s189, %s190
      %p194 = pneg %p188
      %p195 = scmp.eq.s32.totalorder %s22, 7
      %p196 = por %p194, %p195
      %p197 = scmp.ne.s32.totalorder %s189, %s192
      %p198 = scmp.eq.s32.totalorder %s22, 0
      %p199 = por %p197, %p198
      %p200 = scmp.ne.s32.totalorder %s189, %s192
      %p201 = scmp.eq.s32.totalorder %s27, 7
      %p202 = por %p200, %p201
      %p203 = scmp.ne.s32.totalorder %s192, %s193
      %p204 = scmp.eq.s32.totalorder %s27, 0
      %p205 = por %p203, %p204
      %p206 = scmp.ne.s32.totalorder %s192, %s193
      %p207 = scmp.eq.s32.totalorder %s28, 7
      %p208 = por %p206, %p207
      %p210 = scmp.ne.s32.totalorder %s193, %s209
      %p211 = scmp.eq.s32.totalorder %s28, 0
      %p212 = por %p210, %p211
      %p213 = scmp.le.s32.totalorder 1, %s22
      %p214 = scmp.lt.s32.totalorder %s22, 9
      %p215 = pnand %p213, %p214
      %p216 = pneg %p215
      // Predicated region
      $region9: #{isda_loss_forward.5} parent=5 // pred_check
        _
      $region10: #{isda_loss_forward.5} parent=5 // pred_check_branch
        %218 = sbr.rel (%p215) target = $region12
      $region11: #{isda_loss_forward.5} parent=5 // pred_region
        %s219 = ssub.s32 %s22, 1
        // Predicated region
        $region13: #{isda_loss_forward.5} parent=11 // pred_check
          %p220 = pneg %p55
        $region14: #{isda_loss_forward.5} parent=11 // pred_check_branch
          %222 = sbr.rel (%p220) target = $region16
        $region15: #{isda_loss_forward.5} parent=11 // pred_region
          %s224 = ssub.s32 256, 256
          %225 = vsyncadd [#allocation7], %s224
          %s226 = sshll.u32 [#allocation6], 4
          %s227 = int_to_ptr.vmem [resolvable:$true] %s226
          %232 = dma.hbm_to_vmem [thread:$0]  %s0, 256, %s227, [#allocation7], 128, 128, 8
        $region16: #{isda_loss_forward.5} parent=11 // pred_fallthru
          _
        // Predicated region
        $region17: #{isda_loss_forward.5} parent=11 // pred_check
          %p233 = pneg %p76
        $region18: #{isda_loss_forward.5} parent=11 // pred_check_branch
          %235 = sbr.rel (%p233) target = $region20
        $region19: #{isda_loss_forward.5} parent=11 // pred_region
          %s237 = ssub.s32 256, 256
          %238 = vsyncadd [#allocation11], %s237
          %s239 = sshll.u32 [#allocation10], 4
          %s240 = int_to_ptr.vmem [resolvable:$true] %s239
          %245 = dma.hbm_to_vmem [thread:$0]  %s1, 256, %s240, [#allocation11], 128, 128, 8
        $region20: #{isda_loss_forward.5} parent=11 // pred_fallthru
          _
        // Predicated region
        $region21: #{isda_loss_forward.5} parent=11 // pred_check
          %p246 = pneg %p151
        $region22: #{isda_loss_forward.5} parent=11 // pred_check_branch
          %248 = sbr.rel (%p246) target = $region24
        $region23: #{isda_loss_forward.5} parent=11 // pred_region
          %s250 = ssub.s32 16, 16
          %251 = vsyncadd [#allocation9], %s250
          %254 = dma.hbm_to_smem %s4, 16, [#allocation14], [#allocation9]
        $region24: #{isda_loss_forward.5} parent=11 // pred_fallthru
          _
      $region12: #{isda_loss_forward.5} parent=5 // pred_fallthru
        _
      %p255 = scmp.lt.s32.totalorder %s22, 8
      // Predicated region
      $region25: #{isda_loss_forward.5} parent=5 // pred_check
        %p256 = pneg %p255
      $region26: #{isda_loss_forward.5} parent=5 // pred_check_branch
        %258 = sbr.rel (%p256) target = $region28
      $region27: #{isda_loss_forward.5} parent=5 // pred_region
        // Predicated region
        $region29: #{isda_loss_forward.5} parent=27 // pred_check
          %p259 = pneg %p96
        $region30: #{isda_loss_forward.5} parent=27 // pred_check_branch
          %261 = sbr.rel (%p259) target = $region32
        $region31: #{isda_loss_forward.5} parent=27 // pred_region
          %s262 = sand.u32 %s22, 1
          %s263 = scalar_lea.sflag [#allocation7], %s262
          %s264 = sand.u32 %s86, 1
          %s265 = scalar_lea.vmem [#allocation12], %s264
          %s267 = ssub.s32 16, 16
          %268 = vsyncadd %s263, %s267
          %s269 = smul.addr %s29, 16
          %s270 = scalar_lea.hbm %s2, %s269
          %s272 = sshll.u32 %s265, 4
          %s273 = int_to_ptr.vmem [resolvable:$true] %s272
          %275 = dma.hbm_to_vmem [thread:$0]  %s270, 16, %s273, %s263
        $region32: #{isda_loss_forward.5} parent=27 // pred_fallthru
          _
        // Predicated region
        $region33: #{isda_loss_forward.5} parent=27 // pred_check
          %p276 = pneg %p124
        $region34: #{isda_loss_forward.5} parent=27 // pred_check_branch
          %278 = sbr.rel (%p276) target = $region36
        $region35: #{isda_loss_forward.5} parent=27 // pred_region
          %s279 = sand.u32 %s22, 1
          %s280 = scalar_lea.sflag [#allocation7], %s279
          %s281 = sand.u32 %s114, 1
          %s282 = smul.addr %s281, 32
          %s283 = scalar_lea.vmem [#allocation13], %s282
          %s284 = smul.u32 4, %s30
          %s286 = ssub.s32 512, 512
          %287 = vsyncadd %s280, %s286
          %s288 = smul.addr %s29, 4
          %s289 = sadd.s32 %s284, %s288
          %s290 = smul.addr %s289, 128
          %s291 = scalar_lea.hbm %s3, %s290
          %s292 = sshll.u32 %s283, 4
          %s293 = int_to_ptr.vmem [resolvable:$true] %s292
          %298 = dma.hbm_to_vmem [thread:$0]  %s291, 512, %s293, %s280, 128, 128, 8
        $region36: #{isda_loss_forward.5} parent=27 // pred_fallthru
          _
      $region28: #{isda_loss_forward.5} parent=5 // pred_fallthru
        _
      %p299 = scmp.le.s32.totalorder 1, %s22
      %p300 = scmp.lt.s32.totalorder %s22, 9
      %p301 = pnand %p299, %p300
      %p302 = pneg %p301
      // Predicated region
      $region37: #{isda_loss_forward.5} parent=5 // pred_check
        _
      $region38: #{isda_loss_forward.5} parent=5 // pred_check_branch
        %304 = sbr.rel (%p301) target = $region40
      $region39: #{isda_loss_forward.5} parent=5 // pred_region
        %s305 = ssub.s32 %s22, 1
        // Predicated region
        $region41: #{isda_loss_forward.5} parent=39 // pred_check
          %p306 = pneg %p55
        $region42: #{isda_loss_forward.5} parent=39 // pred_check_branch
          %308 = sbr.rel (%p306) target = $region44
        $region43: #{isda_loss_forward.5} parent=39 // pred_region
          %309 = dma.done [#allocation7], 256
        $region44: #{isda_loss_forward.5} parent=39 // pred_fallthru
          _
        // Predicated region
        $region45: #{isda_loss_forward.5} parent=39 // pred_check
          %p310 = pneg %p76
        $region46: #{isda_loss_forward.5} parent=39 // pred_check_branch
          %312 = sbr.rel (%p310) target = $region48
        $region47: #{isda_loss_forward.5} parent=39 // pred_region
          %313 = dma.done [#allocation11], 256
        $region48: #{isda_loss_forward.5} parent=39 // pred_fallthru
          _
        %s314 = sand.u32 %s27, 1
        %s315 = scalar_lea.sflag [#allocation7], %s314
        %s316 = sand.u32 %s89, 1
        %s317 = scalar_lea.vmem [#allocation12], %s316
        // Predicated region
        $region49: #{isda_loss_forward.5} parent=39 // pred_check
          %p318 = pneg %p102
        $region50: #{isda_loss_forward.5} parent=39 // pred_check_branch
          %320 = sbr.rel (%p318) target = $region52
        $region51: #{isda_loss_forward.5} parent=39 // pred_region
          %321 = dma.done %s315, 16
        $region52: #{isda_loss_forward.5} parent=39 // pred_fallthru
          _
        %s322 = sand.u32 %s27, 1
        %s323 = scalar_lea.sflag [#allocation7], %s322
        %s324 = sand.u32 %s117, 1
        %s325 = smul.addr %s324, 32
        %s326 = scalar_lea.vmem [#allocation13], %s325
        // Predicated region
        $region53: #{isda_loss_forward.5} parent=39 // pred_check
          %p327 = pneg %p130
        $region54: #{isda_loss_forward.5} parent=39 // pred_check_branch
          %329 = sbr.rel (%p327) target = $region56
        $region55: #{isda_loss_forward.5} parent=39 // pred_region
          %330 = dma.done %s323, 512
        $region56: #{isda_loss_forward.5} parent=39 // pred_fallthru
          _
        // Predicated region
        $region57: #{isda_loss_forward.5} parent=39 // pred_check
          %p331 = pneg %p151
        $region58: #{isda_loss_forward.5} parent=39 // pred_check_branch
          %333 = sbr.rel (%p331) target = $region60
        $region59: #{isda_loss_forward.5} parent=39 // pred_region
          %334 = dma.done [#allocation9], 16
        $region60: #{isda_loss_forward.5} parent=39 // pred_fallthru
          _
        %335 = sfence
        %p336 = pneg %p55
        %p337 = pneg %p52
        %p338 = pneg %p76
        %p339 = pneg %p73
        %s340 = sand.u32 %s27, 1
        %s341 = scalar_lea.sflag [#allocation7], %s340
        %s342 = sand.u32 %s89, 1
        %s343 = scalar_lea.vmem [#allocation12], %s342
        %p344 = pneg %p102
        %p345 = pneg %p99
        %s346 = sand.u32 %s27, 1
        %s347 = scalar_lea.sflag [#allocation7], %s346
        %s348 = sand.u32 %s117, 1
        %s349 = smul.addr %s348, 32
        %s350 = scalar_lea.vmem [#allocation13], %s349
        %p351 = pneg %p130
        %p352 = pneg %p127
        %p353 = pneg %p151
        %p354 = pneg %p148
        %p355 = pneg %p179
        %p356 = pneg %p176
        %s357 = sand.u32 %s166, 1
        %s358 = scalar_lea.sflag [#allocation8], %s357
        %s359 = sand.u32 %s166, 1
        %s360 = smul.addr %s359, 32
        %s361 = scalar_lea.vmem [#allocation15], %s360
        %p362 = pneg %p205
        %p363 = pneg %p202
        %s364 = sand.u32 %s192, 1
        %s365 = scalar_lea.sflag [#allocation17], %s364
        %s366 = sand.u32 %s192, 1
        %s367 = scalar_lea.vmem [#allocation16], %s366
        %s368 = smul.u32 4, %s32
        %s369 = smul.u32 4, %s32
        %p371 = scmp.eq.s32.totalorder %s32, 0
        // Predicated region
        $region61: #{isda_loss_forward.5} parent=39 // pred_check
          %p372 = pneg %p371
        $region62: #{isda_loss_forward.5} parent=39 // pred_check_branch
          %374 = sbr.rel (%p372) target = $region64
        $region63: #{isda_loss_forward.5} parent=39 // pred_region
          %v375 = vld [vmem:[#allocation10] sm:$0xff]
          %v376 = vld [vmem:[#allocation10 + $0x8] sm:$0xff]
          %v377 = vld [vmem:[#allocation6] sm:$0xff]
          %v378 = vld [vmem:[#allocation6 + $0x8] sm:$0xff]
          %v379 = vstv %s31
          %vm380 = vcmp.eq.s32.totalorder %v377, %v379
          %vm381 = vcmp.eq.s32.totalorder %v378, %v379
          %v382 = vsel %vm380, 1, 0
          %v383 = vsel %vm381, 1, 0
          %v384 = vcvt.s32.f32 %v382
          %v385 = vcvt.s32.f32 %v383
          %vm386 = vcmask 7168
          %v387 = vsel %vm386, %v384, 0.0
          %v388 = vsel %vm386, %v385, 0.0
          %v389 = vadd.f32 %v387, %v388
          %v390 = vrot.slane %v389, 4
          %v391 = vadd.f32 %v389, %v390
          %v392 = vrot.slane %v391, 2
          %v393 = vadd.f32 %v391, %v392
          %v394 = vrot.slane %v393, 1
          %v395 = vadd.f32 %v393, %v394
          %v396 = vmax.f32 %v395, 1.0
          %398 = vset.pattern.permute.xlu0 0
          %399 = vperm.xlu0 %398, %v384
          %v400 = vpop.permute.xlu0 %399
          %403 = vset.pattern.permute.xlu0 0
          %404 = vperm.xlu0 %403, %v385
          %v405 = vpop.permute.xlu0 %404
          %v407 = vmul.f32 %v375, %v400
          %v408 = vmul.f32 %v376, %v405
          %vm409 = vcmask 261120
          %v410 = vsel %vm409, %v407, 0.0
          %v411 = vsel %vm409, %v408, 0.0
          %v412 = vadd.f32 %v410, %v411
          %v413 = vrot.slane %v412, 4
          %v414 = vadd.f32 %v412, %v413
          %v415 = vrot.slane %v414, 2
          %v416 = vadd.f32 %v414, %v415
          %v417 = vrot.slane %v416, 1
          %v418 = vadd.f32 %v416, %v417
          %420 = vset.pattern.permute.xlu0 0
          %421 = vperm.xlu0 %420, %v396
          %v422 = vpop.permute.xlu0 %421
          %v424 = vrcp.pop %v422
          %v425 = vmul.f32 %v418, %v424
          %v426 = vsub.f32 %v375, %v425
          %v427 = vsub.f32 %v376, %v425
          %v428 = vmul.f32 %v426, %v400
          %v429 = vmul.f32 %v427, %v405
          %v430 = vpack.c.bf16 %v429, %v428
          %431 = vst.msk [vmem:[#allocation2] sm:$0xff] %vm409, %v430
          %s432 = sld [smem:[#allocation14 + %s31]]
          %v433 = vstv %s432
          %v434 = vadd.f32 %v395, %v433
          %vm435 = vcmp.gt.f32.partialorder %v434, 0.0
          %v436 = vsel %vm435, %v434, 1.0
          %v437 = vrcp.pop %v436
          %v438 = vmul.f32 %v395, %v437
          %v439 = vld [vmem:[%s317] sm:$0x1]
          %v440 = vsub.f32 %v439, %v425
          %vm441 = vcmask 253952
          %442 = vst.msk [vmem:[#allocation3] sm:$0x1] %vm441, %v440
          %vm443 = vcmask 0
          %444 = vst.msk [vmem:[#allocation4] sm:$0x1] %vm443, %v396
          %445 = vst.msk [vmem:[#allocation5] sm:$0x1] %vm443, %v438
          %v446 = vsub.f32 1.0, %v438
          %448 = vset.pattern.permute.xlu0 0
          %449 = vperm.xlu0 %448, %v446
          %v450 = vpop.permute.xlu0 %449
          %v452 = vmul.f32 %v439, %v450
          %454 = vset.pattern.permute.xlu0 0
          %455 = vperm.xlu0 %454, %v438
          %v456 = vpop.permute.xlu0 %455
          %v458 = vmul.f32 %v425, %v456
          %v459 = vadd.f32 %v452, %v458
          %460 = vst.msk [vmem:[%s367] sm:$0x1] %vm441, %v459
        $region64: #{isda_loss_forward.5} parent=39 // pred_fallthru
          _
        %v461 = vld [vmem:[#allocation4] sm:$0x1]
        %v462 = vld [vmem:[#allocation5] sm:$0x1]
        %v463 = vld [vmem:[#allocation2] sm:$0xff]
        %v464 = vld [vmem:[#allocation3] sm:$0x1]
        %465 = vxpose.xlu0.c.b16.start [1/8] %v463, 128
        %466 = vxpose.xlu0.c.b16.cont [2/8] 0, 128
        %467 = vxpose.xlu0.c.b16.cont [3/8] 0, 128
        %468 = vxpose.xlu0.c.b16.cont [4/8] 0, 128
        %469 = vxpose.xlu0.c.b16.cont [5/8] 0, 128
        %470 = vxpose.xlu0.c.b16.cont [6/8] 0, 128
        %471 = vxpose.xlu0.c.b16.cont [7/8] 0, 128
        %472 = vxpose.xlu0.c.b16.end [8/8] 0, 128
        %v473 = vpop.trf.xlu0
        %v474 = vpop.trf.xlu0
        %v475 = vpop.trf.xlu0
        %v476 = vpop.trf.xlu0
        %v477 = vpop.trf.xlu0
        %v478 = vpop.trf.xlu0
        %v479 = vpop.trf.xlu0
        %v480 = vpop.trf.xlu0
        %vm481 = vcmask 130048
        %v483 = vsel %vm481, %v473, 0
        %v486 = vsel %vm481, %v474, 0
        %488 = vmatprep.subr.bf16.mxu0 0
        %489 = vmatpush1.bf16.msra.mxu0 %v463
        %490 = vmatprep.subr.bf16.mxu0 0
        %491 = vmatpush1.bf16.msra.mxu0 0
        %492 = vmatprep.subr.bf16.mxu0 0
        %493 = vmatpush1.bf16.msra.mxu0 0
        %494 = vmatprep.subr.bf16.mxu0 0
        %495 = vmatpush1.bf16.msra.mxu0 0
        %496 = vmatprep.subr.bf16.mxu0 0
        %497 = vmatpush1.bf16.msra.mxu0 0
        %498 = vmatprep.subr.bf16.mxu0 0
        %499 = vmatpush1.bf16.msra.mxu0 0
        %500 = vmatprep.subr.bf16.mxu0 0
        %501 = vmatpush1.bf16.msra.mxu0 0
        %502 = vmatprep.subr.bf16.mxu0 0
        %503 = vmatpush1.bf16.msra.mxu0 0
        %504 = vmatprep.subr.bf16.mxu0 0
        %505 = vmatpush1.bf16.msra.mxu0 0
        %506 = vmatprep.subr.bf16.mxu0 0
        %507 = vmatpush1.bf16.msra.mxu0 0
        %508 = vmatprep.subr.bf16.mxu0 0
        %509 = vmatpush1.bf16.msra.mxu0 0
        %510 = vmatprep.subr.bf16.mxu0 0
        %511 = vmatpush1.bf16.msra.mxu0 0
        %512 = vmatprep.subr.bf16.mxu0 0
        %513 = vmatpush1.bf16.msra.mxu0 0
        %514 = vmatprep.subr.bf16.mxu0 0
        %515 = vmatpush1.bf16.msra.mxu0 0
        %516 = vmatprep.subr.bf16.mxu0 0
        %517 = vmatpush1.bf16.msra.mxu0 0
        %518 = vmatprep.subr.bf16.mxu0 0
        %519 = vmatpush1.bf16.msra.mxu0 0
        %520 = vmatprep.mubr.bf16.mxu0 0
        %521 = vmatmul.mubr.bf16.gmra.mrb[0].mxu0 %v483
        %v522 = vpop.f32.mrb[0].mxu0
        %v523 = vadd.f32 0.0, %v522
        %v524 = vpop.f32.mrb[0].mxu0
        %v525 = vpop.f32.mrb[0].mxu0
        %v526 = vadd.f32 0.0, %v525
        %v527 = vpop.f32.mrb[0].mxu0
        %528 = vmatprep.mubr.bf16.mxu0 0
        %529 = vmatmul.mubr.bf16.gmra.mrb[0].mxu0 %v486
        %v530 = vpop.f32.mrb[0].mxu0
        %v531 = vadd.f32 0.0, %v530
        %v532 = vpop.f32.mrb[0].mxu0
        %v533 = vpop.f32.mrb[0].mxu0
        %v534 = vadd.f32 0.0, %v533
        %v535 = vpop.f32.mrb[0].mxu0
        %536 = vdwg.mxu0
        %v538 = vlaneseq
        %v539 = vshrl.u32 %v538, 7
        %v540 = vsub.s32 0, %v539
        %v541 = vrot.slane %v461, %v540
        %542 = vset.pattern.permute.xlu0 0
        %543 = vperm.xlu0 %542, %v541
        %v544 = vpop.permute.xlu0 %543
        %v546 = vrcp.pop %v544
        %v547 = vmul.f32 %v523, %v546
        %v548 = vmul.f32 %v526, %v546
        %v549 = vmul.f32 %v531, %v546
        %v550 = vmul.f32 %v534, %v546
        %551 = vxpose.xlu0.b32.start [1/16] %v464, 128
        %552 = vxpose.xlu0.b32.cont [2/16] 0.0, 128
        %553 = vxpose.xlu0.b32.cont [3/16] 0.0, 128
        %554 = vxpose.xlu0.b32.cont [4/16] 0.0, 128
        %555 = vxpose.xlu0.b32.cont [5/16] 0.0, 128
        %556 = vxpose.xlu0.b32.cont [6/16] 0.0, 128
        %557 = vxpose.xlu0.b32.cont [7/16] 0.0, 128
        %558 = vxpose.xlu0.b32.cont [8/16] 0.0, 128
        %559 = vxpose.xlu0.b32.cont [9/16] 0.0, 128
        %560 = vxpose.xlu0.b32.cont [10/16] 0.0, 128
        %561 = vxpose.xlu0.b32.cont [11/16] 0.0, 128
        %562 = vxpose.xlu0.b32.cont [12/16] 0.0, 128
        %563 = vxpose.xlu0.b32.cont [13/16] 0.0, 128
        %564 = vxpose.xlu0.b32.cont [14/16] 0.0, 128
        %565 = vxpose.xlu0.b32.cont [15/16] 0.0, 128
        %566 = vxpose.xlu0.b32.end [16/16] 0.0, 128
        %v567 = vpop.trf.xlu0
        %v568 = vpop.trf.xlu0
        %v569 = vpop.trf.xlu0
        %v570 = vpop.trf.xlu0
        %v571 = vpop.trf.xlu0
        %v572 = vpop.trf.xlu0
        %v573 = vpop.trf.xlu0
        %v574 = vpop.trf.xlu0
        %v575 = vpop.trf.xlu0
        %v576 = vpop.trf.xlu0
        %v577 = vpop.trf.xlu0
        %v578 = vpop.trf.xlu0
        %v579 = vpop.trf.xlu0
        %v580 = vpop.trf.xlu0
        %v581 = vpop.trf.xlu0
        %v582 = vpop.trf.xlu0
        %vm583 = vcmask 7168
        %v585 = vsel %vm583, %v567, 0
        %v588 = vsel %vm583, %v568, 0
        %v591 = vsel %vm583, %v569, 0
        %v594 = vsel %vm583, %v570, 0
        %vm596 = vcmask 1040384
        %v598 = vsel %vm596, %v464, 0
        %600 = vmatprep.subr.mxu0 0.0
        %601 = vmatpush1.msra.mxu0 %v598
        %602 = vmatprep.subr.mxu0 0.0
        %603 = vmatpush1.msra.mxu0 0.0
        %604 = vmatprep.subr.mxu0 0.0
        %605 = vmatpush1.msra.mxu0 0.0
        %606 = vmatprep.subr.mxu0 0.0
        %607 = vmatpush1.msra.mxu0 0.0
        %608 = vmatprep.subr.mxu0 0.0
        %609 = vmatpush1.msra.mxu0 0.0
        %610 = vmatprep.subr.mxu0 0.0
        %611 = vmatpush1.msra.mxu0 0.0
        %612 = vmatprep.subr.mxu0 0.0
        %613 = vmatpush1.msra.mxu0 0.0
        %614 = vmatprep.subr.mxu0 0.0
        %615 = vmatpush1.msra.mxu0 0.0
        %616 = vmatprep.subr.mxu0 0.0
        %617 = vmatpush1.msra.mxu0 0.0
        %618 = vmatprep.subr.mxu0 0.0
        %619 = vmatpush1.msra.mxu0 0.0
        %620 = vmatprep.subr.mxu0 0.0
        %621 = vmatpush1.msra.mxu0 0.0
        %622 = vmatprep.subr.mxu0 0.0
        %623 = vmatpush1.msra.mxu0 0.0
        %624 = vmatprep.subr.mxu0 0.0
        %625 = vmatpush1.msra.mxu0 0.0
        %626 = vmatprep.subr.mxu0 0.0
        %627 = vmatpush1.msra.mxu0 0.0
        %628 = vmatprep.subr.mxu0 0.0
        %629 = vmatpush1.msra.mxu0 0.0
        %630 = vmatprep.subr.mxu0 0.0
        %631 = vmatpush1.msra.mxu0 0.0
        %632 = vmatprep.subr.mxu0 0.0
        %633 = vmatpush1.msra.mxu0 0.0
        %634 = vmatprep.subr.mxu0 0.0
        %635 = vmatpush1.msra.mxu0 0.0
        %636 = vmatprep.subr.mxu0 0.0
        %637 = vmatpush1.msra.mxu0 0.0
        %638 = vmatprep.subr.mxu0 0.0
        %639 = vmatpush1.msra.mxu0 0.0
        %640 = vmatprep.subr.mxu0 0.0
        %641 = vmatpush1.msra.mxu0 0.0
        %642 = vmatprep.subr.mxu0 0.0
        %643 = vmatpush1.msra.mxu0 0.0
        %644 = vmatprep.subr.mxu0 0.0
        %645 = vmatpush1.msra.mxu0 0.0
        %646 = vmatprep.subr.mxu0 0.0
        %647 = vmatpush1.msra.mxu0 0.0
        %648 = vmatprep.subr.mxu0 0.0
        %649 = vmatpush1.msra.mxu0 0.0
        %650 = vmatprep.subr.mxu0 0.0
        %651 = vmatpush1.msra.mxu0 0.0
        %652 = vmatprep.subr.mxu0 0.0
        %653 = vmatpush1.msra.mxu0 0.0
        %654 = vmatprep.subr.mxu0 0.0
        %655 = vmatpush1.msra.mxu0 0.0
        %656 = vmatprep.subr.mxu0 0.0
        %657 = vmatpush1.msra.mxu0 0.0
        %658 = vmatprep.subr.mxu0 0.0
        %659 = vmatpush1.msra.mxu0 0.0
        %660 = vmatprep.subr.mxu0 0.0
        %661 = vmatpush1.msra.mxu0 0.0
        %662 = vmatprep.subr.mxu0 0.0
        %663 = vmatpush1.msra.mxu0 0.0
        %664 = vmatprep.mubr.f32.mxu0 0.0
        %665 = vmatmul.mubr.f32.gmra.mrb[0].mxu0 %v585
        %v666 = vpop.f32.mrb[0].mxu0
        %v667 = vadd.f32 0.0, %v666
        %v668 = vpop.f32.mrb[0].mxu0
        %669 = vmatprep.mubr.f32.mxu0 0.0
        %670 = vmatmul.mubr.f32.gmra.mrb[0].mxu0 %v588
        %v671 = vpop.f32.mrb[0].mxu0
        %v672 = vadd.f32 0.0, %v671
        %v673 = vpop.f32.mrb[0].mxu0
        %674 = vmatprep.mubr.f32.mxu0 0.0
        %675 = vmatmul.mubr.f32.gmra.mrb[0].mxu0 %v591
        %v676 = vpop.f32.mrb[0].mxu0
        %v677 = vadd.f32 0.0, %v676
        %v678 = vpop.f32.mrb[0].mxu0
        %679 = vmatprep.mubr.f32.mxu0 0.0
        %680 = vmatmul.mubr.f32.gmra.mrb[0].mxu0 %v594
        %v681 = vpop.f32.mrb[0].mxu0
        %v682 = vadd.f32 0.0, %v681
        %v683 = vpop.f32.mrb[0].mxu0
        %684 = vdwg.mxu0
        %v685 = vld [vmem:[%s326] sm:$0xff]
        %v686 = vld [vmem:[%s326 + $0x8] sm:$0xff]
        %v687 = vld [vmem:[%s326 + $0x10] sm:$0xff]
        %v688 = vld [vmem:[%s326 + $0x18] sm:$0xff]
        %v689 = vsub.f32 1.0, %v462
        %v691 = vlaneseq
        %v692 = vshrl.u32 %v691, 7
        %v693 = vsub.s32 0, %v692
        %v694 = vrot.slane %v689, %v693
        %695 = vset.pattern.permute.xlu0 0
        %696 = vperm.xlu0 %695, %v694
        %v697 = vpop.permute.xlu0 %696
        %v699 = vmul.f32 %v685, %v697
        %v700 = vmul.f32 %v686, %v697
        %v701 = vmul.f32 %v687, %v697
        %v702 = vmul.f32 %v688, %v697
        %v704 = vlaneseq
        %v705 = vshrl.u32 %v704, 7
        %v706 = vsub.s32 0, %v705
        %v707 = vrot.slane %v462, %v706
        %708 = vset.pattern.permute.xlu0 0
        %709 = vperm.xlu0 %708, %v707
        %v710 = vpop.permute.xlu0 %709
        %v712 = vmul.f32 %v547, %v710
        %v713 = vmul.f32 %v548, %v710
        %v714 = vmul.f32 %v549, %v710
        %v715 = vmul.f32 %v550, %v710
        %v716 = vadd.f32 %v699, %v712
        %v717 = vadd.f32 %v700, %v713
        %v718 = vadd.f32 %v701, %v714
        %v719 = vadd.f32 %v702, %v715
        %v720 = vmul.f32 %v462, %v689
        %v722 = vlaneseq
        %v723 = vshrl.u32 %v722, 7
        %v724 = vsub.s32 0, %v723
        %v725 = vrot.slane %v720, %v724
        %726 = vset.pattern.permute.xlu0 0
        %727 = vperm.xlu0 %726, %v725
        %v728 = vpop.permute.xlu0 %727
        %v730 = vmul.f32 %v728, %v667
        %v731 = vmul.f32 %v728, %v672
        %v732 = vmul.f32 %v728, %v677
        %v733 = vmul.f32 %v728, %v682
        %v734 = vadd.f32 %v716, %v730
        %v735 = vadd.f32 %v717, %v731
        %v736 = vadd.f32 %v718, %v732
        %v737 = vadd.f32 %v719, %v733
        %vm738 = vcmask 261120
        %739 = vst.msk [vmem:[%s361] sm:$0xff] %vm738, %v734
        %740 = vst.msk [vmem:[%s361 + $0x8] sm:$0xff] %vm738, %v735
        %741 = vst.msk [vmem:[%s361 + $0x10] sm:$0xff] %vm738, %v736
        %742 = vst.msk [vmem:[%s361 + $0x18] sm:$0xff] %vm738, %v737
        %s743 = sand.u32 %s166, 1
        %s744 = scalar_lea.sflag [#allocation8], %s743
        %s745 = sand.u32 %s166, 1
        %s746 = smul.addr %s745, 32
        %s747 = scalar_lea.vmem [#allocation15], %s746
        %s748 = sand.u32 %s192, 1
        %s749 = scalar_lea.sflag [#allocation17], %s748
        %s750 = sand.u32 %s192, 1
        %s751 = scalar_lea.vmem [#allocation16], %s750
        // Predicated region
        $region65: #{isda_loss_forward.5} parent=39 // pred_check
          %p752 = pneg %p176
        $region66: #{isda_loss_forward.5} parent=39 // pred_check_branch
          %754 = sbr.rel (%p752) target = $region68
        $region67: #{isda_loss_forward.5} parent=39 // pred_region
          %s755 = smul.u32 4, %s32
          %s757 = ssub.s32 512, 512
          %758 = vsyncadd %s744, %s757
          %s759 = smul.addr %s31, 4
          %s760 = sadd.s32 %s755, %s759
          %s761 = smul.addr %s760, 128
          %s762 = scalar_lea.hbm %s5, %s761
          %s763 = sshll.u32 %s747, 4
          %s764 = int_to_ptr.vmem [resolvable:$true] %s763
          %769 = dma.vmem_to_hbm [thread:$0]  %s764, 512, %s762, %s744, 128, 128, 8
        $region68: #{isda_loss_forward.5} parent=39 // pred_fallthru
          _
        // Predicated region
        $region69: #{isda_loss_forward.5} parent=39 // pred_check
          %p770 = pneg %p202
        $region70: #{isda_loss_forward.5} parent=39 // pred_check_branch
          %772 = sbr.rel (%p770) target = $region72
        $region71: #{isda_loss_forward.5} parent=39 // pred_region
          %s774 = ssub.s32 16, 16
          %775 = vsyncadd %s749, %s774
          %s776 = smul.addr %s31, 16
          %s777 = scalar_lea.hbm %s6, %s776
          %s779 = sshll.u32 %s751, 4
          %s780 = int_to_ptr.vmem [resolvable:$true] %s779
          %782 = dma.vmem_to_hbm [thread:$0]  %s780, 16, %s777, %s749
        $region72: #{isda_loss_forward.5} parent=39 // pred_fallthru
          _
      $region40: #{isda_loss_forward.5} parent=5 // pred_fallthru
        _
      %p783 = scmp.le.s32.totalorder 2, %s22
      // Predicated region
      $region73: #{isda_loss_forward.5} parent=5 // pred_check
        %p784 = pneg %p783
      $region74: #{isda_loss_forward.5} parent=5 // pred_check_branch
        %786 = sbr.rel (%p784) target = $region76
      $region75: #{isda_loss_forward.5} parent=5 // pred_region
        %s787 = ssub.s32 %s22, 2
        // Predicated region
        $region77: #{isda_loss_forward.5} parent=75 // pred_check
          %p788 = pneg %p182
        $region78: #{isda_loss_forward.5} parent=75 // pred_check_branch
          %790 = sbr.rel (%p788) target = $region80
        $region79: #{isda_loss_forward.5} parent=75 // pred_region
          %s791 = sand.u32 %s167, 1
          %s792 = scalar_lea.sflag [#allocation8], %s791
          %s793 = sand.u32 %s167, 1
          %s794 = smul.addr %s793, 32
          %s795 = scalar_lea.vmem [#allocation15], %s794
          %796 = dma.done %s792, 512
        $region80: #{isda_loss_forward.5} parent=75 // pred_fallthru
          _
        // Predicated region
        $region81: #{isda_loss_forward.5} parent=75 // pred_check
          %p797 = pneg %p208
        $region82: #{isda_loss_forward.5} parent=75 // pred_check_branch
          %799 = sbr.rel (%p797) target = $region84
        $region83: #{isda_loss_forward.5} parent=75 // pred_region
          %s800 = sand.u32 %s193, 1
          %s801 = scalar_lea.sflag [#allocation17], %s800
          %s802 = sand.u32 %s193, 1
          %s803 = scalar_lea.vmem [#allocation16], %s802
          %804 = dma.done %s801, 16
        $region84: #{isda_loss_forward.5} parent=75 // pred_fallthru
          _
      $region76: #{isda_loss_forward.5} parent=5 // pred_fallthru
        _
    $region6: #{isda_loss_forward.5} parent=1 // loop_footer
      %s26 = sadd.s32 1, %s22
    $region7: #{isda_loss_forward.5} parent=1 // loop_footer_branch
      %21 = sbr.rel target = $region3
    $region8: #{isda_loss_forward.5} parent=1 // loop_exit
      _
    %805 = vsyncpa [#allocation7], 1
    %s806 = scalar_lea.sflag [#allocation7], 1
    %807 = vsyncpa %s806, 1
    %808 = vsyncpa [#allocation11], 1
    %809 = vsyncpa [#allocation8], 1
    %s810 = scalar_lea.sflag [#allocation8], 1
    %811 = vsyncpa %s810, 1
    %812 = vsyncpa [#allocation17], 1
    %s813 = scalar_lea.sflag [#allocation17], 1
    %814 = vsyncpa %s813, 1
    %815 = vsyncpa [#allocation9], 1
    %s816 = scalar_lea.sflag [#allocation9], 1
    %817 = vsyncpa %s816, 1

// kernel: isda_loss_forward.4
$region0: #{isda_loss_forward.4}
  #allocation0 [shape = 'u32[]', space=smem, size = 0x4, offset = 0x4, fixed_abs, tag = 'smem constant byte address 0x4 - core index']
  #allocation1 [shape = 'u32[144,128]{1,0:T(1,128)}', space=vmem, size = 0x12000, scoped, tag = 'internal scratch']
  %s0 = inlined_call_operand.vmem [shape: bf16[8,32], index: 0, kind: input, shape index: {}]
  %s1 = inlined_call_operand.vmem [shape: bf16[32,128], index: 1, kind: input, shape index: {}]
  %s2 = inlined_call_operand.vmem [shape: f32[1,128], index: 2, kind: input, shape index: {}]
  %s3 = inlined_call_operand.vmem [shape: f32[8,128], index: 3, kind: output, shape index: {}]
  %s4 = sld [smem:[#allocation0]]
  $region22: #{isda_loss_forward.4} parent=0
    _
  %s6 = ssub.s32 1, %s4
  %s7 = scalar_select 0, %s6, %s4
  // Predicated region
  $region2: #{isda_loss_forward.4} parent=0 // pred_check
    _
  $region3: #{isda_loss_forward.4} parent=0 // pred_check_branch
    %9 = sbr.rel (0) target = $region5
  $region4: #{isda_loss_forward.4} parent=0 // pred_region
    _
  $region5: #{isda_loss_forward.4} parent=0 // pred_fallthru
    _
  // Predicated region
  $region6: #{isda_loss_forward.4} parent=0 // pred_check
    _
  $region7: #{isda_loss_forward.4} parent=0 // pred_check_branch
    %11 = sbr.rel (0) target = $region9
  $region8: #{isda_loss_forward.4} parent=0 // pred_region
    _
  $region9: #{isda_loss_forward.4} parent=0 // pred_fallthru
    _
  // Predicated region
  $region10: #{isda_loss_forward.4} parent=0 // pred_check
    _
  $region11: #{isda_loss_forward.4} parent=0 // pred_check_branch
    %13 = sbr.rel (0) target = $region13
  $region12: #{isda_loss_forward.4} parent=0 // pred_region
    _
  $region13: #{isda_loss_forward.4} parent=0 // pred_fallthru
    _
  %v15 = vld [vmem:[%s0] sm:$0xf]
  %v16 = vld [vmem:[%s1] sm:$0xf]
  %v17 = vld [vmem:[%s1 + $0x4] sm:$0xf]
  %v18 = vld [vmem:[%s1 + $0x8] sm:$0xf]
  %v19 = vld [vmem:[%s1 + $0xc] sm:$0xf]
  %v20 = vld [vmem:[%s2] sm:$0x1]
  %v22 = vlaneseq
  %v23 = vshrl.u32 %v22, 7
  %v24 = vsub.s32 0, %v23
  %v25 = vrot.slane %v20, %v24
  %v31 = vunpack.c.l.b16 %v16
  %v32 = vunpack.c.l.b16 %v17
  %v33 = vunpack.c.l.b16 %v18
  %v34 = vunpack.c.l.b16 %v19
  %v35 = vpack.c.b16 %v32, %v31
  %v36 = vpack.c.b16 %v34, %v33
  %vm39 = vcmask 261120
  %v41 = vsel %vm39, %v15, 0
  %43 = vmatprep.subr.bf16.mxu0 0
  %44 = vmatpush1.bf16.msra.mxu0 %v35
  %45 = vmatprep.subr.bf16.mxu0 0
  %46 = vmatpush1.bf16.msra.mxu0 %v36
  %47 = vmatprep.subr.bf16.mxu0 0
  %48 = vmatpush1.bf16.msra.mxu0 0
  %49 = vmatprep.subr.bf16.mxu0 0
  %50 = vmatpush1.bf16.msra.mxu0 0
  %51 = vmatprep.subr.bf16.mxu0 0
  %52 = vmatpush1.bf16.msra.mxu0 0
  %53 = vmatprep.subr.bf16.mxu0 0
  %54 = vmatpush1.bf16.msra.mxu0 0
  %55 = vmatprep.subr.bf16.mxu0 0
  %56 = vmatpush1.bf16.msra.mxu0 0
  %57 = vmatprep.subr.bf16.mxu0 0
  %58 = vmatpush1.bf16.msra.mxu0 0
  %59 = vmatprep.subr.bf16.mxu0 0
  %60 = vmatpush1.bf16.msra.mxu0 0
  %61 = vmatprep.subr.bf16.mxu0 0
  %62 = vmatpush1.bf16.msra.mxu0 0
  %63 = vmatprep.subr.bf16.mxu0 0
  %64 = vmatpush1.bf16.msra.mxu0 0
  %65 = vmatprep.subr.bf16.mxu0 0
  %66 = vmatpush1.bf16.msra.mxu0 0
  %67 = vmatprep.subr.bf16.mxu0 0
  %68 = vmatpush1.bf16.msra.mxu0 0
  %69 = vmatprep.subr.bf16.mxu0 0
  %70 = vmatpush1.bf16.msra.mxu0 0
  %71 = vmatprep.subr.bf16.mxu0 0
  %72 = vmatpush1.bf16.msra.mxu0 0
  %73 = vmatprep.subr.bf16.mxu0 0
  %74 = vmatpush1.bf16.msra.mxu0 0
  %75 = vmatprep.mubr.bf16.mxu0 0
  %76 = vmatmul.mubr.bf16.gmra.mrb[0].mxu0 %v41
  %v77 = vpop.f32.mrb[0].mxu0
  %v78 = vadd.f32 %v25, %v77
  %v79 = vpop.f32.mrb[0].mxu0
  %v80 = vpop.f32.mrb[0].mxu0
  %v81 = vpop.f32.mrb[0].mxu0
  %82 = vdwg.mxu0
  %83 = vst [vmem:[%s3] sm:$0xff] %v78
  // Predicated region
  $region14: #{isda_loss_forward.4} parent=0 // pred_check
    _
  $region15: #{isda_loss_forward.4} parent=0 // pred_check_branch
    %85 = sbr.rel (0) target = $region17
  $region16: #{isda_loss_forward.4} parent=0 // pred_region
    _
  $region17: #{isda_loss_forward.4} parent=0 // pred_fallthru
    _
  // Predicated region
  $region18: #{isda_loss_forward.4} parent=0 // pred_check
    _
  $region19: #{isda_loss_forward.4} parent=0 // pred_check_branch
    %87 = sbr.rel (0) target = $region21
  $region20: #{isda_loss_forward.4} parent=0 // pred_region
    _
  $region21: #{isda_loss_forward.4} parent=0 // pred_fallthru
    _

// kernel: isda_loss_forward.7
$region0: #{isda_loss_forward.7}
  #allocation0 [shape = 'u32[]', space=smem, size = 0x4, offset = 0x4, fixed_abs, tag = 'smem constant byte address 0x4 - core index']
  #allocation1 [shape = 'u32[144,128]{1,0:T(1,128)}', space=vmem, size = 0x12000, scoped, tag = 'internal scratch']
  #allocation2 [shape = 'f32[1,1]{1,0:T(1,128)}', space=vmem, size = 0x200, scoped, tag = 'scratch operand']
  #allocation3 [shape = 'f32[1,1]{1,0:T(1,128)}', space=vmem, size = 0x200, scoped, tag = 'scratch operand']
  %s0 = inlined_call_operand.vmem [shape: f32[8,8], index: 0, kind: input, shape index: {}]
  %s1 = inlined_call_operand.vmem [shape: f32[8,16], index: 1, kind: input, shape index: {}]
  %s2 = inlined_call_operand.vmem [shape: s32[8,1], index: 2, kind: input, shape index: {}]
  %s3 = inlined_call_operand.hbm [shape: f32[1,1], index: 3, kind: output, shape index: {}]
  %s4 = sld [smem:[#allocation0]]
  $region30: #{isda_loss_forward.7} parent=0
    _
  %s6 = ssub.s32 1, %s4
  %s7 = scalar_select 0, %s6, %s4
  $region1: #{isda_loss_forward.7} parent=0
    #allocation4 [shape = 'u8[512]{0}', space=vmem, size = 0x400, scoped, tag = 'output window, operand 0, single buffered']
    #allocation5 [shape = 's32[1]{0}', space=sflag, size = 0x4, scoped, tag = 'scoped memory for isda_loss_forward.7']
    %8 = vsyncpa [#allocation5], 0
    // Predicated region
    $region2: #{isda_loss_forward.7} parent=1 // pred_check
      _
    $region3: #{isda_loss_forward.7} parent=1 // pred_check_branch
      %10 = sbr.rel (0) target = $region5
    $region4: #{isda_loss_forward.7} parent=1 // pred_region
      _
    $region5: #{isda_loss_forward.7} parent=1 // pred_fallthru
      _
    // Predicated region
    $region6: #{isda_loss_forward.7} parent=1 // pred_check
      _
    $region7: #{isda_loss_forward.7} parent=1 // pred_check_branch
      %12 = sbr.rel (0) target = $region9
    $region8: #{isda_loss_forward.7} parent=1 // pred_region
      _
    $region9: #{isda_loss_forward.7} parent=1 // pred_fallthru
      _
    // Predicated region
    $region10: #{isda_loss_forward.7} parent=1 // pred_check
      _
    $region11: #{isda_loss_forward.7} parent=1 // pred_check_branch
      %14 = sbr.rel (0) target = $region13
    $region12: #{isda_loss_forward.7} parent=1 // pred_region
      _
    $region13: #{isda_loss_forward.7} parent=1 // pred_fallthru
      _
    %p15 = scmp.eq.s32.totalorder 0, 0
    // Predicated region
    $region14: #{isda_loss_forward.7} parent=1 // pred_check
      %p16 = pneg %p15
    $region15: #{isda_loss_forward.7} parent=1 // pred_check_branch
      %18 = sbr.rel (%p16) target = $region17
    $region16: #{isda_loss_forward.7} parent=1 // pred_region
      %vm19 = vcmask 0
      %20 = vst.msk [vmem:[#allocation2] sm:$0x1] %vm19, 0.0
      %21 = vst.msk [vmem:[#allocation3] sm:$0x1] %vm19, 0.0
    $region17: #{isda_loss_forward.7} parent=1 // pred_fallthru
      _
    %v22 = vld [vmem:[%s0] sm:$0xff]
    %v23 = vld [vmem:[%s2] sm:$0xff]
    %v24 = vlaneseq
    %v25 = vand.u32 %v24, 127
    %26 = vset.pattern.permute.xlu0 0
    %27 = vperm.xlu0 %26, %v23
    %v28 = vpop.permute.xlu0 %27
    %vm29 = vcmp.eq.s32.totalorder %v25, %v28
    %v30 = vsel %vm29, 1, 0
    %v31 = vcvt.s32.f32 %v30
    %vm32 = vcmp.ge.s32.totalorder %v23, 0
    %v33 = vsel %vm32, 1, 0
    %v34 = vcvt.s32.f32 %v33
    %v35 = vld [vmem:[%s1] sm:$0xff]
    %vm36 = vcmask 64512
    %v38 = vsel %vm36, %v31, 0
    %40 = vmatprep.subr.mxu0 0.0
    %41 = vmatpush1.msra.mxu0 %v35
    %42 = vmatprep.subr.mxu0 0.0
    %43 = vmatpush1.msra.mxu0 0.0
    %44 = vmatprep.subr.mxu0 0.0
    %45 = vmatpush1.msra.mxu0 0.0
    %46 = vmatprep.subr.mxu0 0.0
    %47 = vmatpush1.msra.mxu0 0.0
    %48 = vmatprep.subr.mxu0 0.0
    %49 = vmatpush1.msra.mxu0 0.0
    %50 = vmatprep.subr.mxu0 0.0
    %51 = vmatpush1.msra.mxu0 0.0
    %52 = vmatprep.subr.mxu0 0.0
    %53 = vmatpush1.msra.mxu0 0.0
    %54 = vmatprep.subr.mxu0 0.0
    %55 = vmatpush1.msra.mxu0 0.0
    %56 = vmatprep.subr.mxu0 0.0
    %57 = vmatpush1.msra.mxu0 0.0
    %58 = vmatprep.subr.mxu0 0.0
    %59 = vmatpush1.msra.mxu0 0.0
    %60 = vmatprep.subr.mxu0 0.0
    %61 = vmatpush1.msra.mxu0 0.0
    %62 = vmatprep.subr.mxu0 0.0
    %63 = vmatpush1.msra.mxu0 0.0
    %64 = vmatprep.subr.mxu0 0.0
    %65 = vmatpush1.msra.mxu0 0.0
    %66 = vmatprep.subr.mxu0 0.0
    %67 = vmatpush1.msra.mxu0 0.0
    %68 = vmatprep.subr.mxu0 0.0
    %69 = vmatpush1.msra.mxu0 0.0
    %70 = vmatprep.subr.mxu0 0.0
    %71 = vmatpush1.msra.mxu0 0.0
    %72 = vmatprep.subr.mxu0 0.0
    %73 = vmatpush1.msra.mxu0 0.0
    %74 = vmatprep.subr.mxu0 0.0
    %75 = vmatpush1.msra.mxu0 0.0
    %76 = vmatprep.subr.mxu0 0.0
    %77 = vmatpush1.msra.mxu0 0.0
    %78 = vmatprep.subr.mxu0 0.0
    %79 = vmatpush1.msra.mxu0 0.0
    %80 = vmatprep.subr.mxu0 0.0
    %81 = vmatpush1.msra.mxu0 0.0
    %82 = vmatprep.subr.mxu0 0.0
    %83 = vmatpush1.msra.mxu0 0.0
    %84 = vmatprep.subr.mxu0 0.0
    %85 = vmatpush1.msra.mxu0 0.0
    %86 = vmatprep.subr.mxu0 0.0
    %87 = vmatpush1.msra.mxu0 0.0
    %88 = vmatprep.subr.mxu0 0.0
    %89 = vmatpush1.msra.mxu0 0.0
    %90 = vmatprep.subr.mxu0 0.0
    %91 = vmatpush1.msra.mxu0 0.0
    %92 = vmatprep.subr.mxu0 0.0
    %93 = vmatpush1.msra.mxu0 0.0
    %94 = vmatprep.subr.mxu0 0.0
    %95 = vmatpush1.msra.mxu0 0.0
    %96 = vmatprep.subr.mxu0 0.0
    %97 = vmatpush1.msra.mxu0 0.0
    %98 = vmatprep.subr.mxu0 0.0
    %99 = vmatpush1.msra.mxu0 0.0
    %100 = vmatprep.subr.mxu0 0.0
    %101 = vmatpush1.msra.mxu0 0.0
    %102 = vmatprep.subr.mxu0 0.0
    %103 = vmatpush1.msra.mxu0 0.0
    %104 = vmatprep.mubr.f32.mxu0 0.0
    %105 = vmatmul.mubr.f32.gmra.mrb[0].mxu0 %v38
    %v106 = vpop.f32.mrb[0].mxu0
    %v107 = vadd.f32 0.0, %v106
    %v108 = vpop.f32.mrb[0].mxu0
    %109 = vdwg.mxu0
    %v110 = vmul.f32 %v107, 0.5
    %v111 = vadd.f32 %v22, %v110
    %113 = vrot.lane.b32.xlu0 %v110, 120
    %v114 = vpop.permute.xlu0 %113
    %v116 = vadd.f32 %v22, %v114
    %v117 = vsel %vm36, %v111, -inf
    %118 = vmax.xlane.f32.xlu0 %v117
    %v119 = vpop.xlane.xlu0 %118
    %v120 = vsub.f32 %v111, %v119
    %v121 = vmul.f32 %v120, 1.442695
    %v122 = vpow.pop %v121
    %v123 = vsel %vm36, %v122, 0.0
    %124 = vadd.xlane.f32.xlu0 %v123
    %v125 = vpop.xlane.xlu0 %124
    %v126 = vlog2.pop %v125
    %v127 = vmul.f32 %v126, 0.6931472
    %v128 = vadd.f32 %v119, %v127
    %v129 = vmul.f32 %v111, %v31
    %v130 = vsel %vm36, %v129, 0.0
    %131 = vadd.xlane.f32.xlu0 %v130
    %v132 = vpop.xlane.xlu0 %131
    %v133 = vld [vmem:[#allocation2] sm:$0x1]
    %v134 = vsub.f32 %v128, %v132
    %v135 = vmul.f32 %v134, %v34
    %vm136 = vcmask 7168
    %v137 = vsel %vm136, %v135, 0.0
    %138 = vadd.xlane.f32.xlu0 %v137
    %v139 = vpop.xlane.xlu0 %138
    %v140 = vrot.slane %v139, 4
    %v141 = vadd.f32 %v139, %v140
    %v142 = vrot.slane %v141, 2
    %v143 = vadd.f32 %v141, %v142
    %v144 = vrot.slane %v143, 1
    %v145 = vadd.f32 %v143, %v144
    %s146 = vtos %v145
    %v147 = vstv %s146
    %v148 = vadd.f32 %v133, %v147
    %vm149 = vcmask 0
    %150 = vst.msk [vmem:[#allocation2] sm:$0x1] %vm149, %v148
    %v151 = vsub.f32 %v111, %v128
    %v152 = vsel %vm36, %v116, -inf
    %153 = vmax.xlane.f32.xlu0 %v152
    %v154 = vpop.xlane.xlu0 %153
    %v155 = vsub.f32 %v116, %v154
    %v156 = vmul.f32 %v155, 1.442695
    %v157 = vpow.pop %v156
    %v158 = vsel %vm36, %v157, 0.0
    %159 = vadd.xlane.f32.xlu0 %v158
    %v160 = vpop.xlane.xlu0 %159
    %v161 = vlog2.pop %v160
    %v162 = vmul.f32 %v161, 0.6931472
    %v163 = vadd.f32 %v154, %v162
    %v164 = vsub.f32 %v116, %v163
    %v165 = vmul.f32 %v164, 1.442695
    %v166 = vpow.pop %v165
    %v167 = vld [vmem:[#allocation3] sm:$0x1]
    %v168 = vsub.f32 %v164, %v151
    %v169 = vmul.f32 %v166, %v168
    %v170 = vsel %vm36, %v169, 0.0
    %171 = vadd.xlane.f32.xlu0 %v170
    %v172 = vpop.xlane.xlu0 %171
    %v173 = vmul.f32 %v172, %v34
    %v174 = vsel %vm136, %v173, 0.0
    %175 = vadd.xlane.f32.xlu0 %v174
    %v176 = vpop.xlane.xlu0 %175
    %v177 = vrot.slane %v176, 4
    %v178 = vadd.f32 %v176, %v177
    %v179 = vrot.slane %v178, 2
    %v180 = vadd.f32 %v178, %v179
    %v181 = vrot.slane %v180, 1
    %v182 = vadd.f32 %v180, %v181
    %s183 = vtos %v182
    %v184 = vstv %s183
    %v185 = vadd.f32 %v167, %v184
    %186 = vst.msk [vmem:[#allocation3] sm:$0x1] %vm149, %v185
    // Predicated region
    $region18: #{isda_loss_forward.7} parent=1 // pred_check
      %p187 = pneg %p15
    $region19: #{isda_loss_forward.7} parent=1 // pred_check_branch
      %189 = sbr.rel (%p187) target = $region21
    $region20: #{isda_loss_forward.7} parent=1 // pred_region
      %v190 = vld [vmem:[#allocation2] sm:$0x1]
      %v191 = vrcp.pop 8.0
      %v192 = vmul.f32 %v190, %v191
      %v193 = vld [vmem:[#allocation3] sm:$0x1]
      %v194 = vrcp.pop 64.0
      %v195 = vmul.f32 %v193, %v194
      %v196 = vadd.f32 %v192, %v195
      %197 = vst.msk [vmem:[#allocation4] sm:$0x1] %vm149, %v196
    $region21: #{isda_loss_forward.7} parent=1 // pred_fallthru
      _
    // Predicated region
    $region22: #{isda_loss_forward.7} parent=1 // pred_check
      _
    $region23: #{isda_loss_forward.7} parent=1 // pred_check_branch
      %199 = sbr.rel (0) target = $region25
    $region24: #{isda_loss_forward.7} parent=1 // pred_region
      %s201 = ssub.s32 16, 16
      %202 = vsyncadd [#allocation5], %s201
      %s204 = sshll.u32 [#allocation4], 4
      %s205 = int_to_ptr.vmem [resolvable:$true] %s204
      %207 = dma.vmem_to_hbm [thread:$0]  %s205, 16, %s3, [#allocation5]
    $region25: #{isda_loss_forward.7} parent=1 // pred_fallthru
      _
    // Predicated region
    $region26: #{isda_loss_forward.7} parent=1 // pred_check
      _
    $region27: #{isda_loss_forward.7} parent=1 // pred_check_branch
      %209 = sbr.rel (0) target = $region29
    $region28: #{isda_loss_forward.7} parent=1 // pred_region
      %210 = dma.done [#allocation5], 16
    $region29: #{isda_loss_forward.7} parent=1 // pred_fallthru
      _
    %211 = vsyncpa [#allocation5], 1

</llo_original>
